<compile_context>
chip_gen: v7x
topology: tpu7x:2x2x1
jax: 0.10.0
libtpu: 0.0.40
codegen_flags: <defaults>
</compile_context>

<pallas_src>
import functools

import jax
import jax.numpy as jnp
from jax.experimental import pallas as pl
from jax.experimental.pallas import tpu as pltpu


def _make_conv_kernel(KH, KW, SH, SW, DH, DW, PH, PW, H, W, H_out, W_out,
                      C_in, C_out):
    HW = H_out * W_out

    def conv_kernel(x_ref, w_ref, b_ref, y_ref, sum_ref, ssq_ref,
                    xpad_ref, col_ref):
        # x_ref:   (1, H, W, C_in)            one input sample (NHWC block)
        # w_ref:   (C_out, KH*KW*C_in)        weights, contraction cols ordered (kh, kw, ci)
        # b_ref:   (C_out, 1)                 conv bias
        # y_ref:   (1, C_out, H_out*W_out)    conv output, NCHW-flattened (lane-dense)
        # sum_ref: (1, C_out, 1)              per-sample per-channel sum of y
        # ssq_ref: (1, C_out, 1)              per-sample per-channel sum of y*y
        # xpad_ref:(H_pad, W_pad, C_in)       VMEM scratch: zero-padded ReLU'd input
        # col_ref: (H_out*W_out, KH*KW*C_in)  VMEM scratch: im2col matrix

        # Fused ReLU + zero padding, entirely in VMEM (padding border stays 0).
        xpad_ref[...] = jnp.zeros_like(xpad_ref)
        xpad_ref[PH:PH + H, PW:PW + W, :] = jnp.maximum(x_ref[0], 0.0)
        xpad = xpad_ref[...]

        # im2col: one (H_out*W_out, C_in) slab per dilated tap.  The reshape
        # keeps the minor (C_in) dim, so it is a cheap sublane merge only.
        # TODO(synk): for stride > 1 the strided lax.slice materialises a
        # relayout per tap; fine for stride=1 (this module's test config).
        for kh in range(KH):
            for kw in range(KW):
                h0 = kh * DH
                w0 = kw * DW
                patch = jax.lax.slice(
                    xpad,
                    (h0, w0, 0),
                    (h0 + SH * (H_out - 1) + 1, w0 + SW * (W_out - 1) + 1, C_in),
                    (SH, SW, 1))                     # (H_out, W_out, C_in)
                c0 = (kh * KW + kw) * C_in
                col_ref[:, c0:c0 + C_in] = patch.reshape(HW, C_in)

        # Single K = KH*KW*C_in GEMM in NT form: (C_out, K) x (HW, K)^T.
        # Accumulator / output is lane-dense (C_out, HW).
        # TODO(synk): optionally cast operands to bf16 on v6e/v7x for the
        # full-rate MXU path; kept f32 to match PyTorch f32 numerics.
        acc = jax.lax.dot_general(
            w_ref[...], col_ref[...],
            dimension_numbers=(((1,), (1,)), ((), ())),
            preferred_element_type=jnp.float32)      # (C_out, HW)
        y = acc + b_ref[...]                         # bias broadcast over lanes

        y_ref[0] = y.astype(y_ref.dtype)
        # Per-sample BatchNorm partial statistics (lane-axis reductions).
        sum_ref[0] = jnp.sum(y, axis=1, keepdims=True)
        ssq_ref[0] = jnp.sum(y * y, axis=1, keepdims=True)

    return conv_kernel


def _make_bn_kernel(count, eps):
    inv_count = 1.0 / count

    def bn_kernel(y_ref, sum_ref, ssq_ref, g_ref, b_ref, o_ref):
        # y_ref:   (1, C_out, HW)   this sample's conv output
        # sum_ref: (N, C_out, 1)    per-sample channel sums (all samples, tiny)
        # ssq_ref: (N, C_out, 1)    per-sample channel sums of squares
        # g_ref:   (C_out, 1)  gamma       b_ref: (C_out, 1)  beta
        # o_ref:   (1, C_out, HW)
        s = jnp.sum(sum_ref[...], axis=0)            # (C_out, 1)
        ss = jnp.sum(ssq_ref[...], axis=0)           # (C_out, 1)
        mean = s * inv_count
        var = ss * inv_count - mean * mean           # biased (training-mode) var
        inv = jax.lax.rsqrt(var + eps)
        scale = g_ref[...] * inv
        shift = b_ref[...] - mean * scale
        o_ref[0] = (y_ref[0] * scale + shift).astype(o_ref.dtype)

    return bn_kernel


@functools.partial(jax.jit, static_argnames=("stride", "dilation"))
def dilated_conv_forward(x_nchw, w_oihw, bias, gamma, beta, *, stride, dilation):
    """ReLU -> dilated Conv2d -> BatchNorm2d (training-mode batch stats)."""
    N, C_in, H, W = x_nchw.shape
    C_out, _, KH, KW = w_oihw.shape
    SH = SW = stride
    DH = DW = dilation
    PH = (KH - 1) * DH // 2
    PW = (KW - 1) * DW // 2
    eps = 1e-5

    H_out = (H + 2 * PH - DH * (KH - 1) - 1) // SH + 1
    W_out = (W + 2 * PW - DW * (KW - 1) - 1) // SW + 1
    HW = H_out * W_out
    H_pad, W_pad = H + 2 * PH, W + 2 * PW
    KK = KH * KW

    # Tiny glue ops (weights are 8x4x3x3; input transpose lets the in-kernel
    # im2col reshape keep the minor dim, which is the only layout-safe path).
    x_nhwc = jnp.transpose(x_nchw, (0, 2, 3, 1))
    w_mat = jnp.transpose(w_oihw, (0, 2, 3, 1)).reshape(C_out, KK * C_in)
    bias2d = bias.reshape(C_out, 1)

    conv_kernel = _make_conv_kernel(KH, KW, SH, SW, DH, DW, PH, PW, H, W,
                                    H_out, W_out, C_in, C_out)
    y_flat, ch_sum, ch_ssq = pl.pallas_call(
        conv_kernel,
        out_shape=(
            jax.ShapeDtypeStruct((N, C_out, HW), jnp.float32),
            jax.ShapeDtypeStruct((N, C_out, 1), jnp.float32),
            jax.ShapeDtypeStruct((N, C_out, 1), jnp.float32),
        ),
        grid_spec=pltpu.PrefetchScalarGridSpec(
            num_scalar_prefetch=0,
            grid=(N,),
            in_specs=[
                pl.BlockSpec((1, H, W, C_in), lambda n: (n, 0, 0, 0)),
                pl.BlockSpec((C_out, KK * C_in), lambda n: (0, 0)),
                pl.BlockSpec((C_out, 1), lambda n: (0, 0)),
            ],
            out_specs=[
                pl.BlockSpec((1, C_out, HW), lambda n: (n, 0, 0)),
                pl.BlockSpec((1, C_out, 1), lambda n: (n, 0, 0)),
                pl.BlockSpec((1, C_out, 1), lambda n: (n, 0, 0)),
            ],
            scratch_shapes=[
                pltpu.VMEM((H_pad, W_pad, C_in), jnp.float32),
                pltpu.VMEM((HW, KK * C_in), jnp.float32),
            ],
        ),
        compiler_params=pltpu.CompilerParams(dimension_semantics=("parallel",)),
    )(x_nhwc, w_mat, bias2d)

    bn_kernel = _make_bn_kernel(float(N * HW), eps)
    out_flat = pl.pallas_call(
        bn_kernel,
        out_shape=jax.ShapeDtypeStruct((N, C_out, HW), jnp.float32),
        grid_spec=pltpu.PrefetchScalarGridSpec(
            num_scalar_prefetch=0,
            grid=(N,),
            in_specs=[
                pl.BlockSpec((1, C_out, HW), lambda n: (n, 0, 0)),
                pl.BlockSpec((N, C_out, 1), lambda n: (0, 0, 0)),
                pl.BlockSpec((N, C_out, 1), lambda n: (0, 0, 0)),
                pl.BlockSpec((C_out, 1), lambda n: (0, 0)),
                pl.BlockSpec((C_out, 1), lambda n: (0, 0)),
            ],
            out_specs=pl.BlockSpec((1, C_out, HW), lambda n: (n, 0, 0)),
        ),
        compiler_params=pltpu.CompilerParams(dimension_semantics=("parallel",)),
    )(y_flat, ch_sum, ch_ssq, gamma.reshape(C_out, 1), beta.reshape(C_out, 1))

    # (N, C_out, H_out*W_out) -> (N, C_out, H_out, W_out): metadata-only reshape.
    return out_flat.reshape(N, C_out, H_out, W_out)


def _reference(x_nchw, w_oihw, bias, gamma, beta, stride, dilation):
    """Pure-JAX reference for validation (matches DilatedConv.forward)."""
    KH = w_oihw.shape[2]
    padding = (KH - 1) * dilation // 2
    xr = jnp.maximum(x_nchw, 0.0)
    y = jax.lax.conv_general_dilated(
        xr, w_oihw, window_strides=(stride, stride),
        padding=((padding, padding), (padding, padding)),
        rhs_dilation=(dilation, dilation),
        dimension_numbers=("NCHW", "OIHW", "NCHW"),
    ) + bias[None, :, None, None]
    mean = y.mean(axis=(0, 2, 3), keepdims=True)
    var = ((y - mean) ** 2).mean(axis=(0, 2, 3), keepdims=True)  # biased
    out = (gamma[None, :, None, None] * (y - mean) / jnp.sqrt(var + 1e-5)
           + beta[None, :, None, None])
    return out


if __name__ == "__main__":
    # Module hyper-params: DilatedConv(C_in, C_out, kernel_size, stride, dilation=2)
    C_in, C_out, K, stride, dilation = 4, 8, 3, 1, 2
    N, H, W = 2, 16, 16

    key = jax.random.PRNGKey(0)
    k_x, k_w, k_b = jax.random.split(key, 3)

    x = jax.random.normal(k_x, (N, C_in, H, W), jnp.float32)        # NCHW input
    w = jax.random.normal(k_w, (C_out, C_in, K, K), jnp.float32) * 0.1
    bias = jax.random.normal(k_b, (C_out,), jnp.float32) * 0.1
    gamma = jnp.ones((C_out,), jnp.float32)   # BatchNorm2d default init
    beta = jnp.zeros((C_out,), jnp.float32)

    out = dilated_conv_forward(x, w, bias, gamma, beta,
                               stride=stride, dilation=dilation)
    out = jax.block_until_ready(out)

    ref = _reference(x, w, bias, gamma, beta, stride, dilation)

    padding = (K - 1) * dilation // 2
    H_out = (H + 2 * padding - dilation * (K - 1) - 1) // stride + 1
    W_out = (W + 2 * padding - dilation * (K - 1) - 1) // stride + 1
    assert out.shape == (N, C_out, H_out, W_out), out.shape
    max_err = float(jnp.max(jnp.abs(out - ref)))
    assert jnp.allclose(out, ref, atol=1e-4, rtol=1e-4), max_err

    print("KERNEL_OK")
</pallas_src>

<mosaic_0001>
module attributes {stable_mosaic.version = 11 : i64} {
  func.func @bn_kernel(%arg0: i32, %arg1: memref<1x8x256xf32, #tpu.memory_space<vmem>>, %arg2: memref<2x8x1xf32, #tpu.memory_space<vmem>>, %arg3: memref<2x8x1xf32, #tpu.memory_space<vmem>>, %arg4: memref<8x1xf32, #tpu.memory_space<vmem>>, %arg5: memref<8x1xf32, #tpu.memory_space<vmem>>, %arg6: memref<1x8x256xf32, #tpu.memory_space<vmem>>) attributes {dimension_semantics = [#tpu.dimension_semantics<parallel>], iteration_bounds = array<i64: 2>, scalar_prefetch = 0 : i64, scratch_operands = 0 : i64, tpu.core_type = #tpu.core_type<tc>, window_params = [{transform_indices = @transform_0, window_bounds = array<i64: 1, 8, 256>}, {pipeline_mode = #tpu.pipeline_mode<synchronous>, transform_indices = @transform_1, window_bounds = array<i64: 2, 8, 1>}, {pipeline_mode = #tpu.pipeline_mode<synchronous>, transform_indices = @transform_2, window_bounds = array<i64: 2, 8, 1>}, {pipeline_mode = #tpu.pipeline_mode<synchronous>, transform_indices = @transform_3, window_bounds = array<i64: 8, 1>}, {pipeline_mode = #tpu.pipeline_mode<synchronous>, transform_indices = @transform_4, window_bounds = array<i64: 8, 1>}, {transform_indices = @transform_5, window_bounds = array<i64: 1, 8, 256>}]} {
    %c0 = arith.constant 0 : index
    %c0_0 = arith.constant 0 : index
    %c0_1 = arith.constant 0 : index
    %0 = vector.load %arg2[%c0, %c0_0, %c0_1] : memref<2x8x1xf32, #tpu.memory_space<vmem>>, vector<2x8x1xf32>
    %cst = arith.constant dense<0.000000e+00> : vector<8x1xf32>
    %1 = vector.multi_reduction <add>, %0, %cst [0] : vector<2x8x1xf32> to vector<8x1xf32>
    %c0_2 = arith.constant 0 : index
    %c0_3 = arith.constant 0 : index
    %c0_4 = arith.constant 0 : index
    %2 = vector.load %arg3[%c0_2, %c0_3, %c0_4] : memref<2x8x1xf32, #tpu.memory_space<vmem>>, vector<2x8x1xf32>
    %cst_5 = arith.constant dense<0.000000e+00> : vector<8x1xf32>
    %3 = vector.multi_reduction <add>, %2, %cst_5 [0] : vector<2x8x1xf32> to vector<8x1xf32>
    %cst_6 = arith.constant 0.001953125 : f32
    %4 = vector.broadcast %cst_6 : f32 to vector<8x1xf32>
    %5 = arith.mulf %1, %4 : vector<8x1xf32>
    %cst_7 = arith.constant 0.001953125 : f32
    %6 = vector.broadcast %cst_7 : f32 to vector<8x1xf32>
    %7 = arith.mulf %3, %6 : vector<8x1xf32>
    %8 = arith.mulf %5, %5 : vector<8x1xf32>
    %9 = arith.subf %7, %8 : vector<8x1xf32>
    %cst_8 = arith.constant 9.99999974E-6 : f32
    %10 = vector.broadcast %cst_8 : f32 to vector<8x1xf32>
    %11 = arith.addf %9, %10 : vector<8x1xf32>
    %12 = math.rsqrt %11 : vector<8x1xf32>
    %c0_9 = arith.constant 0 : index
    %c0_10 = arith.constant 0 : index
    %13 = vector.load %arg4[%c0_9, %c0_10] : memref<8x1xf32, #tpu.memory_space<vmem>>, vector<8x1xf32>
    %14 = arith.mulf %13, %12 : vector<8x1xf32>
    %c0_11 = arith.constant 0 : index
    %c0_12 = arith.constant 0 : index
    %15 = vector.load %arg5[%c0_11, %c0_12] : memref<8x1xf32, #tpu.memory_space<vmem>>, vector<8x1xf32>
    %16 = arith.mulf %5, %14 : vector<8x1xf32>
    %17 = arith.subf %15, %16 : vector<8x1xf32>
    %c0_13 = arith.constant 0 : index
    %c0_14 = arith.constant 0 : index
    %c0_15 = arith.constant 0 : index
    %18 = vector.load %arg1[%c0_13, %c0_14, %c0_15] : memref<1x8x256xf32, #tpu.memory_space<vmem>>, vector<1x8x256xf32>
    %19 = vector.shape_cast %18 : vector<1x8x256xf32> to vector<8x256xf32>
    %20 = vector.broadcast %14 : vector<8x1xf32> to vector<8x256xf32>
    %21 = arith.mulf %19, %20 : vector<8x256xf32>
    %22 = vector.broadcast %17 : vector<8x1xf32> to vector<8x256xf32>
    %23 = arith.addf %21, %22 : vector<8x256xf32>
    %c0_16 = arith.constant 0 : index
    %c0_17 = arith.constant 0 : index
    %c0_18 = arith.constant 0 : index
    %24 = vector.load %arg6[%c0_16, %c0_17, %c0_18] : memref<1x8x256xf32, #tpu.memory_space<vmem>>, vector<1x8x256xf32>
    %25 = vector.shape_cast %24 : vector<1x8x256xf32> to vector<8x256xf32>
    %26 = vector.shape_cast %23 : vector<8x256xf32> to vector<1x8x256xf32>
    tpu.vector_store %arg6[%c0_16, %c0_17, %c0_18], %26 {strides = array<i32>} : memref<1x8x256xf32, #tpu.memory_space<vmem>>, vector<1x8x256xf32>,
    return
  }
  func.func @transform_0(%arg0: i32) -> (i32, i32, i32) {
    %c0_i32 = arith.constant 0 : i32
    %c0_i32_0 = arith.constant 0 : i32
    %c0_i32_1 = arith.constant 0 : i32
    return %arg0, %c0_i32, %c0_i32_0 : i32, i32, i32
  }
  func.func @transform_1(%arg0: i32) -> (i32, i32, i32) {
    %c0_i32 = arith.constant 0 : i32
    %c0_i32_0 = arith.constant 0 : i32
    %c0_i32_1 = arith.constant 0 : i32
    %c0_i32_2 = arith.constant 0 : i32
    return %c0_i32, %c0_i32_0, %c0_i32_1 : i32, i32, i32
  }
  func.func @transform_2(%arg0: i32) -> (i32, i32, i32) {
    %c0_i32 = arith.constant 0 : i32
    %c0_i32_0 = arith.constant 0 : i32
    %c0_i32_1 = arith.constant 0 : i32
    %c0_i32_2 = arith.constant 0 : i32
    return %c0_i32, %c0_i32_0, %c0_i32_1 : i32, i32, i32
  }
  func.func @transform_3(%arg0: i32) -> (i32, i32) {
    %c0_i32 = arith.constant 0 : i32
    %c0_i32_0 = arith.constant 0 : i32
    %c0_i32_1 = arith.constant 0 : i32
    return %c0_i32, %c0_i32_0 : i32, i32
  }
  func.func @transform_4(%arg0: i32) -> (i32, i32) {
    %c0_i32 = arith.constant 0 : i32
    %c0_i32_0 = arith.constant 0 : i32
    %c0_i32_1 = arith.constant 0 : i32
    return %c0_i32, %c0_i32_0 : i32, i32
  }
  func.func @transform_5(%arg0: i32) -> (i32, i32, i32) {
    %c0_i32 = arith.constant 0 : i32
    %c0_i32_0 = arith.constant 0 : i32
    %c0_i32_1 = arith.constant 0 : i32
    return %arg0, %c0_i32, %c0_i32_0 : i32, i32, i32
  }
}

module attributes {stable_mosaic.version = 11 : i64} {
  func.func @conv_kernel(%arg0: i32, %arg1: memref<1x16x16x4xf32, #tpu.memory_space<vmem>>, %arg2: memref<8x36xf32, #tpu.memory_space<vmem>>, %arg3: memref<8x1xf32, #tpu.memory_space<vmem>>, %arg4: memref<1x8x256xf32, #tpu.memory_space<vmem>>, %arg5: memref<1x8x1xf32, #tpu.memory_space<vmem>>, %arg6: memref<1x8x1xf32, #tpu.memory_space<vmem>>, %arg7: memref<20x20x4xf32, #tpu.memory_space<vmem>>, %arg8: memref<256x36xf32, #tpu.memory_space<vmem>>) attributes {dimension_semantics = [#tpu.dimension_semantics<parallel>], iteration_bounds = array<i64: 2>, scalar_prefetch = 0 : i64, scratch_operands = 2 : i64, tpu.core_type = #tpu.core_type<tc>, window_params = [{transform_indices = @transform_0, window_bounds = array<i64: 1, 16, 16, 4>}, {pipeline_mode = #tpu.pipeline_mode<synchronous>, transform_indices = @transform_1, window_bounds = array<i64: 8, 36>}, {pipeline_mode = #tpu.pipeline_mode<synchronous>, transform_indices = @transform_2, window_bounds = array<i64: 8, 1>}, {transform_indices = @transform_3, window_bounds = array<i64: 1, 8, 256>}, {transform_indices = @transform_4, window_bounds = array<i64: 1, 8, 1>}, {transform_indices = @transform_5, window_bounds = array<i64: 1, 8, 1>}]} {
    %cst = arith.constant 0.000000e+00 : f32
    %0 = vector.broadcast %cst : f32 to vector<20x20x4xf32>
    %c0 = arith.constant 0 : index
    %c0_0 = arith.constant 0 : index
    %c0_1 = arith.constant 0 : index
    %1 = vector.load %arg7[%c0, %c0_0, %c0_1] : memref<20x20x4xf32, #tpu.memory_space<vmem>>, vector<20x20x4xf32>
    tpu.vector_store %arg7[%c0, %c0_0, %c0_1], %0 {strides = array<i32>} : memref<20x20x4xf32, #tpu.memory_space<vmem>>, vector<20x20x4xf32>,
    %c0_2 = arith.constant 0 : index
    %c0_3 = arith.constant 0 : index
    %c0_4 = arith.constant 0 : index
    %c0_5 = arith.constant 0 : index
    %2 = vector.load %arg1[%c0_2, %c0_3, %c0_4, %c0_5] : memref<1x16x16x4xf32, #tpu.memory_space<vmem>>, vector<1x16x16x4xf32>
    %3 = vector.shape_cast %2 : vector<1x16x16x4xf32> to vector<16x16x4xf32>
    %cst_6 = arith.constant 0.000000e+00 : f32
    %4 = vector.broadcast %cst_6 : f32 to vector<16x16x4xf32>
    %5 = arith.maximumf %3, %4 : vector<16x16x4xf32>
    %c2 = arith.constant 2 : index
    %c2_7 = arith.constant 2 : index
    %c0_8 = arith.constant 0 : index
    %6 = vector.load %arg7[%c2, %c2_7, %c0_8] : memref<20x20x4xf32, #tpu.memory_space<vmem>>, vector<16x16x4xf32>
    tpu.vector_store %arg7[%c2, %c2_7, %c0_8], %5 {strides = array<i32>} : memref<20x20x4xf32, #tpu.memory_space<vmem>>, vector<16x16x4xf32>,
    %c0_9 = arith.constant 0 : index
    %c0_10 = arith.constant 0 : index
    %c0_11 = arith.constant 0 : index
    %7 = vector.load %arg7[%c0_9, %c0_10, %c0_11] : memref<20x20x4xf32, #tpu.memory_space<vmem>>, vector<20x20x4xf32>
    %8 = vector.extract_strided_slice %7 {offsets = [0, 0, 0], sizes = [16, 16, 4], strides = [1, 1, 1]} : vector<20x20x4xf32> to vector<16x16x4xf32>
    %9 = vector.shape_cast %8 : vector<16x16x4xf32> to vector<256x4xf32>
    %c0_12 = arith.constant 0 : index
    %c0_13 = arith.constant 0 : index
    %10 = vector.load %arg8[%c0_12, %c0_13] : memref<256x36xf32, #tpu.memory_space<vmem>>, vector<256x4xf32>
    tpu.vector_store %arg8[%c0_12, %c0_13], %9 {strides = array<i32>} : memref<256x36xf32, #tpu.memory_space<vmem>>, vector<256x4xf32>,
    %11 = vector.extract_strided_slice %7 {offsets = [0, 2, 0], sizes = [16, 16, 4], strides = [1, 1, 1]} : vector<20x20x4xf32> to vector<16x16x4xf32>
    %12 = vector.shape_cast %11 : vector<16x16x4xf32> to vector<256x4xf32>
    %c0_14 = arith.constant 0 : index
    %c4 = arith.constant 4 : index
    %13 = vector.load %arg8[%c0_14, %c4] : memref<256x36xf32, #tpu.memory_space<vmem>>, vector<256x4xf32>
    tpu.vector_store %arg8[%c0_14, %c4], %12 {strides = array<i32>} : memref<256x36xf32, #tpu.memory_space<vmem>>, vector<256x4xf32>,
    %14 = vector.extract_strided_slice %7 {offsets = [0, 4, 0], sizes = [16, 16, 4], strides = [1, 1, 1]} : vector<20x20x4xf32> to vector<16x16x4xf32>
    %15 = vector.shape_cast %14 : vector<16x16x4xf32> to vector<256x4xf32>
    %c0_15 = arith.constant 0 : index
    %c8 = arith.constant 8 : index
    %16 = vector.load %arg8[%c0_15, %c8] : memref<256x36xf32, #tpu.memory_space<vmem>>, vector<256x4xf32>
    tpu.vector_store %arg8[%c0_15, %c8], %15 {strides = array<i32>} : memref<256x36xf32, #tpu.memory_space<vmem>>, vector<256x4xf32>,
    %17 = vector.extract_strided_slice %7 {offsets = [2, 0, 0], sizes = [16, 16, 4], strides = [1, 1, 1]} : vector<20x20x4xf32> to vector<16x16x4xf32>
    %18 = vector.shape_cast %17 : vector<16x16x4xf32> to vector<256x4xf32>
    %c0_16 = arith.constant 0 : index
    %c12 = arith.constant 12 : index
    %19 = vector.load %arg8[%c0_16, %c12] : memref<256x36xf32, #tpu.memory_space<vmem>>, vector<256x4xf32>
    tpu.vector_store %arg8[%c0_16, %c12], %18 {strides = array<i32>} : memref<256x36xf32, #tpu.memory_space<vmem>>, vector<256x4xf32>,
    %20 = vector.extract_strided_slice %7 {offsets = [2, 2, 0], sizes = [16, 16, 4], strides = [1, 1, 1]} : vector<20x20x4xf32> to vector<16x16x4xf32>
    %21 = vector.shape_cast %20 : vector<16x16x4xf32> to vector<256x4xf32>
    %c0_17 = arith.constant 0 : index
    %c16 = arith.constant 16 : index
    %22 = vector.load %arg8[%c0_17, %c16] : memref<256x36xf32, #tpu.memory_space<vmem>>, vector<256x4xf32>
    tpu.vector_store %arg8[%c0_17, %c16], %21 {strides = array<i32>} : memref<256x36xf32, #tpu.memory_space<vmem>>, vector<256x4xf32>,
    %23 = vector.extract_strided_slice %7 {offsets = [2, 4, 0], sizes = [16, 16, 4], strides = [1, 1, 1]} : vector<20x20x4xf32> to vector<16x16x4xf32>
    %24 = vector.shape_cast %23 : vector<16x16x4xf32> to vector<256x4xf32>
    %c0_18 = arith.constant 0 : index
    %c20 = arith.constant 20 : index
    %25 = vector.load %arg8[%c0_18, %c20] : memref<256x36xf32, #tpu.memory_space<vmem>>, vector<256x4xf32>
    tpu.vector_store %arg8[%c0_18, %c20], %24 {strides = array<i32>} : memref<256x36xf32, #tpu.memory_space<vmem>>, vector<256x4xf32>,
    %26 = vector.extract_strided_slice %7 {offsets = [4, 0, 0], sizes = [16, 16, 4], strides = [1, 1, 1]} : vector<20x20x4xf32> to vector<16x16x4xf32>
    %27 = vector.shape_cast %26 : vector<16x16x4xf32> to vector<256x4xf32>
    %c0_19 = arith.constant 0 : index
    %c24 = arith.constant 24 : index
    %28 = vector.load %arg8[%c0_19, %c24] : memref<256x36xf32, #tpu.memory_space<vmem>>, vector<256x4xf32>
    tpu.vector_store %arg8[%c0_19, %c24], %27 {strides = array<i32>} : memref<256x36xf32, #tpu.memory_space<vmem>>, vector<256x4xf32>,
    %29 = vector.extract_strided_slice %7 {offsets = [4, 2, 0], sizes = [16, 16, 4], strides = [1, 1, 1]} : vector<20x20x4xf32> to vector<16x16x4xf32>
    %30 = vector.shape_cast %29 : vector<16x16x4xf32> to vector<256x4xf32>
    %c0_20 = arith.constant 0 : index
    %c28 = arith.constant 28 : index
    %31 = vector.load %arg8[%c0_20, %c28] : memref<256x36xf32, #tpu.memory_space<vmem>>, vector<256x4xf32>
    tpu.vector_store %arg8[%c0_20, %c28], %30 {strides = array<i32>} : memref<256x36xf32, #tpu.memory_space<vmem>>, vector<256x4xf32>,
    %32 = vector.extract_strided_slice %7 {offsets = [4, 4, 0], sizes = [16, 16, 4], strides = [1, 1, 1]} : vector<20x20x4xf32> to vector<16x16x4xf32>
    %33 = vector.shape_cast %32 : vector<16x16x4xf32> to vector<256x4xf32>
    %c0_21 = arith.constant 0 : index
    %c32 = arith.constant 32 : index
    %34 = vector.load %arg8[%c0_21, %c32] : memref<256x36xf32, #tpu.memory_space<vmem>>, vector<256x4xf32>
    tpu.vector_store %arg8[%c0_21, %c32], %33 {strides = array<i32>} : memref<256x36xf32, #tpu.memory_space<vmem>>, vector<256x4xf32>,
    %c0_22 = arith.constant 0 : index
    %c0_23 = arith.constant 0 : index
    %35 = vector.load %arg2[%c0_22, %c0_23] : memref<8x36xf32, #tpu.memory_space<vmem>>, vector<8x36xf32>
    %c0_24 = arith.constant 0 : index
    %c0_25 = arith.constant 0 : index
    %36 = vector.load %arg8[%c0_24, %c0_25] : memref<256x36xf32, #tpu.memory_space<vmem>>, vector<256x36xf32>
    %cst_26 = arith.constant dense<0.000000e+00> : vector<8x256xf32>
    %37 = tpu.matmul %35, %36, %cst_26 {dimension_numbers = #tpu.dot_dimension_numbers<[1], [1], [0], [0], [0, 0, 1, 0], [], []>} : vector<8x36xf32>, vector<256x36xf32>, vector<8x256xf32> -> vector<8x256xf32>
    %c0_27 = arith.constant 0 : index
    %c0_28 = arith.constant 0 : index
    %38 = vector.load %arg3[%c0_27, %c0_28] : memref<8x1xf32, #tpu.memory_space<vmem>>, vector<8x1xf32>
    %39 = vector.broadcast %38 : vector<8x1xf32> to vector<8x256xf32>
    %40 = arith.addf %37, %39 : vector<8x256xf32>
    %c0_29 = arith.constant 0 : index
    %c0_30 = arith.constant 0 : index
    %c0_31 = arith.constant 0 : index
    %41 = vector.load %arg4[%c0_29, %c0_30, %c0_31] : memref<1x8x256xf32, #tpu.memory_space<vmem>>, vector<1x8x256xf32>
    %42 = vector.shape_cast %41 : vector<1x8x256xf32> to vector<8x256xf32>
    %43 = vector.shape_cast %40 : vector<8x256xf32> to vector<1x8x256xf32>
    tpu.vector_store %arg4[%c0_29, %c0_30, %c0_31], %43 {strides = array<i32>} : memref<1x8x256xf32, #tpu.memory_space<vmem>>, vector<1x8x256xf32>,
    %cst_32 = arith.constant dense<0.000000e+00> : vector<8xf32>
    %44 = vector.multi_reduction <add>, %40, %cst_32 [1] : vector<8x256xf32> to vector<8xf32>
    %45 = vector.shape_cast %44 : vector<8xf32> to vector<8x1xf32>
    %c0_33 = arith.constant 0 : index
    %c0_34 = arith.constant 0 : index
    %c0_35 = arith.constant 0 : index
    %46 = vector.load %arg5[%c0_33, %c0_34, %c0_35] : memref<1x8x1xf32, #tpu.memory_space<vmem>>, vector<1x8x1xf32>
    %47 = vector.shape_cast %46 : vector<1x8x1xf32> to vector<8x1xf32>
    %48 = vector.shape_cast %45 : vector<8x1xf32> to vector<1x8x1xf32>
    tpu.vector_store %arg5[%c0_33, %c0_34, %c0_35], %48 {strides = array<i32>} : memref<1x8x1xf32, #tpu.memory_space<vmem>>, vector<1x8x1xf32>,
    %49 = arith.mulf %40, %40 : vector<8x256xf32>
    %cst_36 = arith.constant dense<0.000000e+00> : vector<8xf32>
    %50 = vector.multi_reduction <add>, %49, %cst_36 [1] : vector<8x256xf32> to vector<8xf32>
    %51 = vector.shape_cast %50 : vector<8xf32> to vector<8x1xf32>
    %c0_37 = arith.constant 0 : index
    %c0_38 = arith.constant 0 : index
    %c0_39 = arith.constant 0 : index
    %52 = vector.load %arg6[%c0_37, %c0_38, %c0_39] : memref<1x8x1xf32, #tpu.memory_space<vmem>>, vector<1x8x1xf32>
    %53 = vector.shape_cast %52 : vector<1x8x1xf32> to vector<8x1xf32>
    %54 = vector.shape_cast %51 : vector<8x1xf32> to vector<1x8x1xf32>
    tpu.vector_store %arg6[%c0_37, %c0_38, %c0_39], %54 {strides = array<i32>} : memref<1x8x1xf32, #tpu.memory_space<vmem>>, vector<1x8x1xf32>,
    return
  }
  func.func @transform_0(%arg0: i32) -> (i32, i32, i32, i32) {
    %c0_i32 = arith.constant 0 : i32
    %c0_i32_0 = arith.constant 0 : i32
    %c0_i32_1 = arith.constant 0 : i32
    %c0_i32_2 = arith.constant 0 : i32
    return %arg0, %c0_i32, %c0_i32_0, %c0_i32_1 : i32, i32, i32, i32
  }
  func.func @transform_1(%arg0: i32) -> (i32, i32) {
    %c0_i32 = arith.constant 0 : i32
    %c0_i32_0 = arith.constant 0 : i32
    %c0_i32_1 = arith.constant 0 : i32
    return %c0_i32, %c0_i32_0 : i32, i32
  }
  func.func @transform_2(%arg0: i32) -> (i32, i32) {
    %c0_i32 = arith.constant 0 : i32
    %c0_i32_0 = arith.constant 0 : i32
    %c0_i32_1 = arith.constant 0 : i32
    return %c0_i32, %c0_i32_0 : i32, i32
  }
  func.func @transform_3(%arg0: i32) -> (i32, i32, i32) {
    %c0_i32 = arith.constant 0 : i32
    %c0_i32_0 = arith.constant 0 : i32
    %c0_i32_1 = arith.constant 0 : i32
    return %arg0, %c0_i32, %c0_i32_0 : i32, i32, i32
  }
  func.func @transform_4(%arg0: i32) -> (i32, i32, i32) {
    %c0_i32 = arith.constant 0 : i32
    %c0_i32_0 = arith.constant 0 : i32
    %c0_i32_1 = arith.constant 0 : i32
    return %arg0, %c0_i32, %c0_i32_0 : i32, i32, i32
  }
  func.func @transform_5(%arg0: i32) -> (i32, i32, i32) {
    %c0_i32 = arith.constant 0 : i32
    %c0_i32_0 = arith.constant 0 : i32
    %c0_i32_1 = arith.constant 0 : i32
    return %arg0, %c0_i32, %c0_i32_0 : i32, i32, i32
  }
}

</mosaic_0001>

<llo_original>
// kernel: dilated_conv_forward.3
$region0: #{dilated_conv_forward.3}
  #allocation0 [shape = 'u32[]', space=smem, size = 0x4, offset = 0x4, fixed_abs, tag = 'smem constant byte address 0x4 - core index']
  #allocation1 [shape = 'u32[144,128]{1,0:T(1,128)}', space=vmem, size = 0x12000, scoped, tag = 'internal scratch']
  %s0 = inlined_call_operand.vmem [shape: f32[2,8,256], index: 0, kind: input, shape index: {}]
  %s1 = inlined_call_operand.vmem [shape: f32[2,8,1], index: 1, kind: input, shape index: {}]
  %s2 = inlined_call_operand.vmem [shape: f32[2,8,1], index: 2, kind: input, shape index: {}]
  %s3 = inlined_call_operand.vmem [shape: f32[8,1], index: 3, kind: input, shape index: {}]
  %s4 = inlined_call_operand.vmem [shape: f32[8,1], index: 4, kind: input, shape index: {}]
  %s5 = inlined_call_operand.vmem [shape: f32[2,8,256], index: 5, kind: output, shape index: {}]
  %s6 = sld [smem:[#allocation0]]
  $region53: #{dilated_conv_forward.3} parent=0
    _
  %s8 = ssub.s32 1, %s6
  %s9 = scalar_select 0, %s8, %s6
  loop: start=0, step=1, limit=4
  $region2: #{dilated_conv_forward.3} parent=0 // loop_pre_header
    _
  $region3: #{dilated_conv_forward.3} parent=0 // loop_header
    %s11 = sphi 0, %s15
    %p12 = scmp.ge.s32.totalorder %s11, 4
    %s21 = sphi 0, %s23
    %s24 = sphi 0, %s21
    %s25 = sphi 0, %s24
    %s41 = sphi 0, %s25
    %s45 = sphi 0, %s45
    %s47 = sphi 0, %s45
    %s48 = sphi 0, %s47
    %s62 = sphi 0, %s48
    %s66 = sphi 0, %s66
    %s68 = sphi 0, %s66
    %s69 = sphi 0, %s68
    %s83 = sphi 0, %s69
    %s87 = sphi 0, %s87
    %s89 = sphi 0, %s87
    %s90 = sphi 0, %s89
    %s104 = sphi 0, %s90
    %s108 = sphi 0, %s108
    %s110 = sphi 0, %s108
    %s111 = sphi 0, %s110
    %s125 = sphi 0, %s111
    %s131 = sphi 0, %s133
    %s134 = sphi 0, %s131
    %s135 = sphi 0, %s134
    %s151 = sphi 0, %s135
  $region4: #{dilated_conv_forward.3} parent=0 // loop_header_branch
    %14 = sbr.rel (%p12) target = $region8
  $region5: #{dilated_conv_forward.3} parent=0 // loop_body
    %s16 = ssub.s32 %s11, 1
    %s17 = ssub.s32 %s11, 2
    %s18 = sadd.s32 %s11, 1
    %s19 = ssub.s32 %s11, %s18
    %p20 = scmp.eq.s32.totalorder %s19, 0
    %s22 = sadd.s32 %s21, 1
    %s23 = scalar_select %p20, %s21, %s22
    %p26 = pneg %p20
    %p27 = scmp.eq.s32.totalorder %s11, 1
    %p28 = por %p26, %p27
    %p29 = scmp.ne.s32.totalorder %s21, %s24
    %p30 = scmp.eq.s32.totalorder %s11, 0
    %p31 = por %p29, %p30
    %p32 = scmp.ne.s32.totalorder %s21, %s24
    %p33 = scmp.eq.s32.totalorder %s16, 1
    %p34 = por %p32, %p33
    %p35 = scmp.ne.s32.totalorder %s24, %s25
    %p36 = scmp.eq.s32.totalorder %s16, 0
    %p37 = por %p35, %p36
    %p38 = scmp.ne.s32.totalorder %s24, %s25
    %p39 = scmp.eq.s32.totalorder %s17, 1
    %p40 = por %p38, %p39
    %p42 = scmp.ne.s32.totalorder %s25, %s41
    %p43 = scmp.eq.s32.totalorder %s17, 0
    %p44 = por %p42, %p43
    %s46 = sadd.s32 %s45, 1
    %p49 = scmp.eq.s32.totalorder %s11, 1
    %p50 = scmp.ne.s32.totalorder %s45, %s47
    %p51 = scmp.eq.s32.totalorder %s11, 0
    %p52 = por %p50, %p51
    %p53 = scmp.ne.s32.totalorder %s45, %s47
    %p54 = scmp.eq.s32.totalorder %s16, 1
    %p55 = por %p53, %p54
    %p56 = scmp.ne.s32.totalorder %s47, %s48
    %p57 = scmp.eq.s32.totalorder %s16, 0
    %p58 = por %p56, %p57
    %p59 = scmp.ne.s32.totalorder %s47, %s48
    %p60 = scmp.eq.s32.totalorder %s17, 1
    %p61 = por %p59, %p60
    %p63 = scmp.ne.s32.totalorder %s48, %s62
    %p64 = scmp.eq.s32.totalorder %s17, 0
    %p65 = por %p63, %p64
    %s67 = sadd.s32 %s66, 1
    %p70 = scmp.eq.s32.totalorder %s11, 1
    %p71 = scmp.ne.s32.totalorder %s66, %s68
    %p72 = scmp.eq.s32.totalorder %s11, 0
    %p73 = por %p71, %p72
    %p74 = scmp.ne.s32.totalorder %s66, %s68
    %p75 = scmp.eq.s32.totalorder %s16, 1
    %p76 = por %p74, %p75
    %p77 = scmp.ne.s32.totalorder %s68, %s69
    %p78 = scmp.eq.s32.totalorder %s16, 0
    %p79 = por %p77, %p78
    %p80 = scmp.ne.s32.totalorder %s68, %s69
    %p81 = scmp.eq.s32.totalorder %s17, 1
    %p82 = por %p80, %p81
    %p84 = scmp.ne.s32.totalorder %s69, %s83
    %p85 = scmp.eq.s32.totalorder %s17, 0
    %p86 = por %p84, %p85
    %s88 = sadd.s32 %s87, 1
    %p91 = scmp.eq.s32.totalorder %s11, 1
    %p92 = scmp.ne.s32.totalorder %s87, %s89
    %p93 = scmp.eq.s32.totalorder %s11, 0
    %p94 = por %p92, %p93
    %p95 = scmp.ne.s32.totalorder %s87, %s89
    %p96 = scmp.eq.s32.totalorder %s16, 1
    %p97 = por %p95, %p96
    %p98 = scmp.ne.s32.totalorder %s89, %s90
    %p99 = scmp.eq.s32.totalorder %s16, 0
    %p100 = por %p98, %p99
    %p101 = scmp.ne.s32.totalorder %s89, %s90
    %p102 = scmp.eq.s32.totalorder %s17, 1
    %p103 = por %p101, %p102
    %p105 = scmp.ne.s32.totalorder %s90, %s104
    %p106 = scmp.eq.s32.totalorder %s17, 0
    %p107 = por %p105, %p106
    %s109 = sadd.s32 %s108, 1
    %p112 = scmp.eq.s32.totalorder %s11, 1
    %p113 = scmp.ne.s32.totalorder %s108, %s110
    %p114 = scmp.eq.s32.totalorder %s11, 0
    %p115 = por %p113, %p114
    %p116 = scmp.ne.s32.totalorder %s108, %s110
    %p117 = scmp.eq.s32.totalorder %s16, 1
    %p118 = por %p116, %p117
    %p119 = scmp.ne.s32.totalorder %s110, %s111
    %p120 = scmp.eq.s32.totalorder %s16, 0
    %p121 = por %p119, %p120
    %p122 = scmp.ne.s32.totalorder %s110, %s111
    %p123 = scmp.eq.s32.totalorder %s17, 1
    %p124 = por %p122, %p123
    %p126 = scmp.ne.s32.totalorder %s111, %s125
    %p127 = scmp.eq.s32.totalorder %s17, 0
    %p128 = por %p126, %p127
    %s129 = ssub.s32 %s11, %s18
    %p130 = scmp.eq.s32.totalorder %s129, 0
    %s132 = sadd.s32 %s131, 1
    %s133 = scalar_select %p130, %s131, %s132
    %p136 = pneg %p130
    %p137 = scmp.eq.s32.totalorder %s11, 1
    %p138 = por %p136, %p137
    %p139 = scmp.ne.s32.totalorder %s131, %s134
    %p140 = scmp.eq.s32.totalorder %s11, 0
    %p141 = por %p139, %p140
    %p142 = scmp.ne.s32.totalorder %s131, %s134
    %p143 = scmp.eq.s32.totalorder %s16, 1
    %p144 = por %p142, %p143
    %p145 = scmp.ne.s32.totalorder %s134, %s135
    %p146 = scmp.eq.s32.totalorder %s16, 0
    %p147 = por %p145, %p146
    %p148 = scmp.ne.s32.totalorder %s134, %s135
    %p149 = scmp.eq.s32.totalorder %s17, 1
    %p150 = por %p148, %p149
    %p152 = scmp.ne.s32.totalorder %s135, %s151
    %p153 = scmp.eq.s32.totalorder %s17, 0
    %p154 = por %p152, %p153
    %p155 = scmp.le.s32.totalorder 1, %s11
    %p156 = scmp.lt.s32.totalorder %s11, 3
    %p157 = pnand %p155, %p156
    %p158 = pneg %p157
    // Predicated region
    $region9: #{dilated_conv_forward.3} parent=5 // pred_check
      _
    $region10: #{dilated_conv_forward.3} parent=5 // pred_check_branch
      %160 = sbr.rel (%p157) target = $region12
    $region11: #{dilated_conv_forward.3} parent=5 // pred_region
      %s161 = ssub.s32 %s11, 1
      // Predicated region
      $region13: #{dilated_conv_forward.3} parent=11 // pred_check
        %p162 = pneg %p58
      $region14: #{dilated_conv_forward.3} parent=11 // pred_check_branch
        %164 = sbr.rel (%p162) target = $region16
      $region15: #{dilated_conv_forward.3} parent=11 // pred_region
        _
      $region16: #{dilated_conv_forward.3} parent=11 // pred_fallthru
        _
      // Predicated region
      $region17: #{dilated_conv_forward.3} parent=11 // pred_check
        %p165 = pneg %p79
      $region18: #{dilated_conv_forward.3} parent=11 // pred_check_branch
        %167 = sbr.rel (%p165) target = $region20
      $region19: #{dilated_conv_forward.3} parent=11 // pred_region
        _
      $region20: #{dilated_conv_forward.3} parent=11 // pred_fallthru
        _
      // Predicated region
      $region21: #{dilated_conv_forward.3} parent=11 // pred_check
        %p168 = pneg %p100
      $region22: #{dilated_conv_forward.3} parent=11 // pred_check_branch
        %170 = sbr.rel (%p168) target = $region24
      $region23: #{dilated_conv_forward.3} parent=11 // pred_region
        _
      $region24: #{dilated_conv_forward.3} parent=11 // pred_fallthru
        _
      // Predicated region
      $region25: #{dilated_conv_forward.3} parent=11 // pred_check
        %p171 = pneg %p121
      $region26: #{dilated_conv_forward.3} parent=11 // pred_check_branch
        %173 = sbr.rel (%p171) target = $region28
      $region27: #{dilated_conv_forward.3} parent=11 // pred_region
        _
      $region28: #{dilated_conv_forward.3} parent=11 // pred_fallthru
        _
    $region12: #{dilated_conv_forward.3} parent=5 // pred_fallthru
      _
    %p174 = scmp.lt.s32.totalorder %s11, 2
    // Predicated region
    $region29: #{dilated_conv_forward.3} parent=5 // pred_check
      %p175 = pneg %p174
    $region30: #{dilated_conv_forward.3} parent=5 // pred_check_branch
      %177 = sbr.rel (%p175) target = $region32
    $region31: #{dilated_conv_forward.3} parent=5 // pred_region
      // Predicated region
      $region33: #{dilated_conv_forward.3} parent=31 // pred_check
        %p178 = pneg %p31
      $region34: #{dilated_conv_forward.3} parent=31 // pred_check_branch
        %180 = sbr.rel (%p178) target = $region36
      $region35: #{dilated_conv_forward.3} parent=31 // pred_region
        %p181 = scmp.lt.s32.totalorder %s11, 1
        %s182 = scalar_select %p181, %s11, 1
        %s183 = smul.addr %s182, 2
        %s184 = smul.addr %s183, 8
        %s185 = scalar_lea.vmem %s0, %s184
      $region36: #{dilated_conv_forward.3} parent=31 // pred_fallthru
        _
    $region32: #{dilated_conv_forward.3} parent=5 // pred_fallthru
      _
    %p186 = scmp.le.s32.totalorder 1, %s11
    %p187 = scmp.lt.s32.totalorder %s11, 3
    %p188 = pnand %p186, %p187
    %p189 = pneg %p188
    // Predicated region
    $region37: #{dilated_conv_forward.3} parent=5 // pred_check
      _
    $region38: #{dilated_conv_forward.3} parent=5 // pred_check_branch
      %191 = sbr.rel (%p188) target = $region40
    $region39: #{dilated_conv_forward.3} parent=5 // pred_region
      %s192 = ssub.s32 %s11, 1
      %p193 = scmp.lt.s32.totalorder %s16, 1
      %s194 = scalar_select %p193, %s16, 1
      %s195 = smul.addr %s194, 2
      %s196 = smul.addr %s195, 8
      %s197 = scalar_lea.vmem %s0, %s196
      %p198 = pneg %p37
      %p199 = pneg %p34
      %p200 = pneg %p58
      %p201 = pneg %p55
      %p202 = pneg %p79
      %p203 = pneg %p76
      %p204 = pneg %p100
      %p205 = pneg %p97
      %p206 = pneg %p121
      %p207 = pneg %p118
      %p208 = pneg %p147
      %p209 = pneg %p144
      %p210 = scmp.lt.s32.totalorder %s16, 1
      %s211 = scalar_select %p210, %s16, 1
      %s212 = smul.addr %s211, 2
      %s213 = smul.addr %s212, 8
      %s214 = scalar_lea.vmem %s5, %s213
      %p215 = scmp.lt.s32.totalorder %s16, 1
      %s216 = scalar_select %p215, %s16, 1
      %s217 = smul.addr %s216, 2
      %s218 = smul.addr %s217, 8
      %s219 = scalar_lea.vmem %s0, %s218
      %p220 = scmp.lt.s32.totalorder %s16, 1
      %s221 = scalar_select %p220, %s16, 1
      %s222 = smul.addr %s221, 2
      %s223 = smul.addr %s222, 8
      %s224 = scalar_lea.vmem %s5, %s223
      %v225 = vld [vmem:[%s1] sm:$0xff]
      %v226 = vld [vmem:[%s1 + $0x8] sm:$0xff]
      %vm227 = vcmask 7168
      %v228 = vsel %vm227, %v225, 0.0
      %v229 = vsel %vm227, %v226, 0.0
      %v230 = vadd.f32 %v228, %v229
      %v231 = vld [vmem:[%s2] sm:$0xff]
      %v232 = vld [vmem:[%s2 + $0x8] sm:$0xff]
      %v233 = vsel %vm227, %v231, 0.0
      %v234 = vsel %vm227, %v232, 0.0
      %v235 = vadd.f32 %v233, %v234
      %v236 = vmul.f32 %v230, 0.001953125
      %v237 = vmul.f32 %v235, 0.001953125
      %v238 = vmul.f32 %v236, %v236
      %v239 = vsub.f32 %v237, %v238
      %v240 = vadd.f32 %v239, 1e-05
      %v241 = vrsqrt.pop %v240
      %v242 = vld [vmem:[%s3] sm:$0xff]
      %v243 = vmul.f32 %v242, %v241
      %v244 = vld [vmem:[%s4] sm:$0xff]
      %v245 = vmul.f32 %v236, %v243
      %v246 = vsub.f32 %v244, %v245
      %v247 = vld [vmem:[%s219] sm:$0xff]
      %v248 = vld [vmem:[%s219 + $0x8] sm:$0xff]
      %250 = vset.pattern.permute.xlu0 0
      %251 = vperm.xlu0 %250, %v243
      %v252 = vpop.permute.xlu0 %251
      %v254 = vmul.f32 %v247, %v252
      %v255 = vmul.f32 %v248, %v252
      %257 = vset.pattern.permute.xlu0 0
      %258 = vperm.xlu0 %257, %v246
      %v259 = vpop.permute.xlu0 %258
      %v261 = vadd.f32 %v254, %v259
      %v262 = vadd.f32 %v255, %v259
      %263 = vst [vmem:[%s224] sm:$0xff] %v261
      %264 = vst [vmem:[%s224 + $0x8] sm:$0xff] %v262
      %p265 = scmp.lt.s32.totalorder %s16, 1
      %s266 = scalar_select %p265, %s16, 1
      %s267 = smul.addr %s266, 2
      %s268 = smul.addr %s267, 8
      %s269 = scalar_lea.vmem %s5, %s268
      // Predicated region
      $region41: #{dilated_conv_forward.3} parent=39 // pred_check
        %p270 = pneg %p144
      $region42: #{dilated_conv_forward.3} parent=39 // pred_check_branch
        %272 = sbr.rel (%p270) target = $region44
      $region43: #{dilated_conv_forward.3} parent=39 // pred_region
        _
      $region44: #{dilated_conv_forward.3} parent=39 // pred_fallthru
        _
    $region40: #{dilated_conv_forward.3} parent=5 // pred_fallthru
      _
    %p273 = scmp.le.s32.totalorder 2, %s11
    // Predicated region
    $region45: #{dilated_conv_forward.3} parent=5 // pred_check
      %p274 = pneg %p273
    $region46: #{dilated_conv_forward.3} parent=5 // pred_check_branch
      %276 = sbr.rel (%p274) target = $region48
    $region47: #{dilated_conv_forward.3} parent=5 // pred_region
      %s277 = ssub.s32 %s11, 2
      // Predicated region
      $region49: #{dilated_conv_forward.3} parent=47 // pred_check
        %p278 = pneg %p150
      $region50: #{dilated_conv_forward.3} parent=47 // pred_check_branch
        %280 = sbr.rel (%p278) target = $region52
      $region51: #{dilated_conv_forward.3} parent=47 // pred_region
        %p281 = scmp.lt.s32.totalorder %s17, 1
        %s282 = scalar_select %p281, %s17, 1
        %s283 = smul.addr %s282, 2
        %s284 = smul.addr %s283, 8
        %s285 = scalar_lea.vmem %s5, %s284
      $region52: #{dilated_conv_forward.3} parent=47 // pred_fallthru
        _
    $region48: #{dilated_conv_forward.3} parent=5 // pred_fallthru
      _
  $region6: #{dilated_conv_forward.3} parent=0 // loop_footer
    %s15 = sadd.s32 1, %s11
  $region7: #{dilated_conv_forward.3} parent=0 // loop_footer_branch
    %10 = sbr.rel target = $region3
  $region8: #{dilated_conv_forward.3} parent=0 // loop_exit
    _

// kernel: dilated_conv_forward.2
$region0: #{dilated_conv_forward.2}
  #allocation0 [shape = 'u32[]', space=smem, size = 0x4, offset = 0x4, fixed_abs, tag = 'smem constant byte address 0x4 - core index']
  #allocation1 [shape = 'u32[144,128]{1,0:T(1,128)}', space=vmem, size = 0x12000, scoped, tag = 'internal scratch']
  #allocation2 [shape = 'f32[20,20,4]{2,1,0:T(8,128)}', space=vmem, size = 0x3c000, scoped, tag = 'scratch operand']
  #allocation3 [shape = 'f32[256,36]{1,0:T(8,128)}', space=vmem, size = 0x20000, scoped, tag = 'scratch operand']
  %s0 = inlined_call_operand.vmem [shape: f32[2,16,16,4], index: 0, kind: input, shape index: {}]
  %s1 = inlined_call_operand.vmem [shape: f32[8,36], index: 1, kind: input, shape index: {}]
  %s2 = inlined_call_operand.vmem [shape: f32[8,1], index: 2, kind: input, shape index: {}]
  %s3 = inlined_call_operand.vmem [shape: f32[2,8,256], index: 3, kind: output, shape index: {0}]
  %s4 = inlined_call_operand.vmem [shape: f32[2,8,1], index: 4, kind: output, shape index: {1}]
  %s5 = inlined_call_operand.vmem [shape: f32[2,8,1], index: 5, kind: output, shape index: {2}]
  %6 = xla_tuple %s3, %s4, %s5
  %s7 = sld [smem:[#allocation0]]
  $region61: #{dilated_conv_forward.2} parent=0
    _
  %s9 = ssub.s32 1, %s7
  %s10 = scalar_select 0, %s9, %s7
  loop: start=0, step=1, limit=4
  $region2: #{dilated_conv_forward.2} parent=0 // loop_pre_header
    _
  $region3: #{dilated_conv_forward.2} parent=0 // loop_header
    %s12 = sphi 0, %s16
    %p13 = scmp.ge.s32.totalorder %s12, 4
    %s22 = sphi 0, %s24
    %s25 = sphi 0, %s22
    %s26 = sphi 0, %s25
    %s42 = sphi 0, %s26
    %s46 = sphi 0, %s46
    %s48 = sphi 0, %s46
    %s49 = sphi 0, %s48
    %s63 = sphi 0, %s49
    %s67 = sphi 0, %s67
    %s69 = sphi 0, %s67
    %s70 = sphi 0, %s69
    %s84 = sphi 0, %s70
    %s90 = sphi 0, %s92
    %s93 = sphi 0, %s90
    %s94 = sphi 0, %s93
    %s110 = sphi 0, %s94
    %s116 = sphi 0, %s118
    %s119 = sphi 0, %s116
    %s120 = sphi 0, %s119
    %s136 = sphi 0, %s120
    %s142 = sphi 0, %s144
    %s145 = sphi 0, %s142
    %s146 = sphi 0, %s145
    %s162 = sphi 0, %s146
  $region4: #{dilated_conv_forward.2} parent=0 // loop_header_branch
    %15 = sbr.rel (%p13) target = $region8
  $region5: #{dilated_conv_forward.2} parent=0 // loop_body
    %s17 = ssub.s32 %s12, 1
    %s18 = ssub.s32 %s12, 2
    %s19 = sadd.s32 %s12, 1
    %s20 = ssub.s32 %s12, %s19
    %p21 = scmp.eq.s32.totalorder %s20, 0
    %s23 = sadd.s32 %s22, 1
    %s24 = scalar_select %p21, %s22, %s23
    %p27 = pneg %p21
    %p28 = scmp.eq.s32.totalorder %s12, 1
    %p29 = por %p27, %p28
    %p30 = scmp.ne.s32.totalorder %s22, %s25
    %p31 = scmp.eq.s32.totalorder %s12, 0
    %p32 = por %p30, %p31
    %p33 = scmp.ne.s32.totalorder %s22, %s25
    %p34 = scmp.eq.s32.totalorder %s17, 1
    %p35 = por %p33, %p34
    %p36 = scmp.ne.s32.totalorder %s25, %s26
    %p37 = scmp.eq.s32.totalorder %s17, 0
    %p38 = por %p36, %p37
    %p39 = scmp.ne.s32.totalorder %s25, %s26
    %p40 = scmp.eq.s32.totalorder %s18, 1
    %p41 = por %p39, %p40
    %p43 = scmp.ne.s32.totalorder %s26, %s42
    %p44 = scmp.eq.s32.totalorder %s18, 0
    %p45 = por %p43, %p44
    %s47 = sadd.s32 %s46, 1
    %p50 = scmp.eq.s32.totalorder %s12, 1
    %p51 = scmp.ne.s32.totalorder %s46, %s48
    %p52 = scmp.eq.s32.totalorder %s12, 0
    %p53 = por %p51, %p52
    %p54 = scmp.ne.s32.totalorder %s46, %s48
    %p55 = scmp.eq.s32.totalorder %s17, 1
    %p56 = por %p54, %p55
    %p57 = scmp.ne.s32.totalorder %s48, %s49
    %p58 = scmp.eq.s32.totalorder %s17, 0
    %p59 = por %p57, %p58
    %p60 = scmp.ne.s32.totalorder %s48, %s49
    %p61 = scmp.eq.s32.totalorder %s18, 1
    %p62 = por %p60, %p61
    %p64 = scmp.ne.s32.totalorder %s49, %s63
    %p65 = scmp.eq.s32.totalorder %s18, 0
    %p66 = por %p64, %p65
    %s68 = sadd.s32 %s67, 1
    %p71 = scmp.eq.s32.totalorder %s12, 1
    %p72 = scmp.ne.s32.totalorder %s67, %s69
    %p73 = scmp.eq.s32.totalorder %s12, 0
    %p74 = por %p72, %p73
    %p75 = scmp.ne.s32.totalorder %s67, %s69
    %p76 = scmp.eq.s32.totalorder %s17, 1
    %p77 = por %p75, %p76
    %p78 = scmp.ne.s32.totalorder %s69, %s70
    %p79 = scmp.eq.s32.totalorder %s17, 0
    %p80 = por %p78, %p79
    %p81 = scmp.ne.s32.totalorder %s69, %s70
    %p82 = scmp.eq.s32.totalorder %s18, 1
    %p83 = por %p81, %p82
    %p85 = scmp.ne.s32.totalorder %s70, %s84
    %p86 = scmp.eq.s32.totalorder %s18, 0
    %p87 = por %p85, %p86
    %s88 = ssub.s32 %s12, %s19
    %p89 = scmp.eq.s32.totalorder %s88, 0
    %s91 = sadd.s32 %s90, 1
    %s92 = scalar_select %p89, %s90, %s91
    %p95 = pneg %p89
    %p96 = scmp.eq.s32.totalorder %s12, 1
    %p97 = por %p95, %p96
    %p98 = scmp.ne.s32.totalorder %s90, %s93
    %p99 = scmp.eq.s32.totalorder %s12, 0
    %p100 = por %p98, %p99
    %p101 = scmp.ne.s32.totalorder %s90, %s93
    %p102 = scmp.eq.s32.totalorder %s17, 1
    %p103 = por %p101, %p102
    %p104 = scmp.ne.s32.totalorder %s93, %s94
    %p105 = scmp.eq.s32.totalorder %s17, 0
    %p106 = por %p104, %p105
    %p107 = scmp.ne.s32.totalorder %s93, %s94
    %p108 = scmp.eq.s32.totalorder %s18, 1
    %p109 = por %p107, %p108
    %p111 = scmp.ne.s32.totalorder %s94, %s110
    %p112 = scmp.eq.s32.totalorder %s18, 0
    %p113 = por %p111, %p112
    %s114 = ssub.s32 %s12, %s19
    %p115 = scmp.eq.s32.totalorder %s114, 0
    %s117 = sadd.s32 %s116, 1
    %s118 = scalar_select %p115, %s116, %s117
    %p121 = pneg %p115
    %p122 = scmp.eq.s32.totalorder %s12, 1
    %p123 = por %p121, %p122
    %p124 = scmp.ne.s32.totalorder %s116, %s119
    %p125 = scmp.eq.s32.totalorder %s12, 0
    %p126 = por %p124, %p125
    %p127 = scmp.ne.s32.totalorder %s116, %s119
    %p128 = scmp.eq.s32.totalorder %s17, 1
    %p129 = por %p127, %p128
    %p130 = scmp.ne.s32.totalorder %s119, %s120
    %p131 = scmp.eq.s32.totalorder %s17, 0
    %p132 = por %p130, %p131
    %p133 = scmp.ne.s32.totalorder %s119, %s120
    %p134 = scmp.eq.s32.totalorder %s18, 1
    %p135 = por %p133, %p134
    %p137 = scmp.ne.s32.totalorder %s120, %s136
    %p138 = scmp.eq.s32.totalorder %s18, 0
    %p139 = por %p137, %p138
    %s140 = ssub.s32 %s12, %s19
    %p141 = scmp.eq.s32.totalorder %s140, 0
    %s143 = sadd.s32 %s142, 1
    %s144 = scalar_select %p141, %s142, %s143
    %p147 = pneg %p141
    %p148 = scmp.eq.s32.totalorder %s12, 1
    %p149 = por %p147, %p148
    %p150 = scmp.ne.s32.totalorder %s142, %s145
    %p151 = scmp.eq.s32.totalorder %s12, 0
    %p152 = por %p150, %p151
    %p153 = scmp.ne.s32.totalorder %s142, %s145
    %p154 = scmp.eq.s32.totalorder %s17, 1
    %p155 = por %p153, %p154
    %p156 = scmp.ne.s32.totalorder %s145, %s146
    %p157 = scmp.eq.s32.totalorder %s17, 0
    %p158 = por %p156, %p157
    %p159 = scmp.ne.s32.totalorder %s145, %s146
    %p160 = scmp.eq.s32.totalorder %s18, 1
    %p161 = por %p159, %p160
    %p163 = scmp.ne.s32.totalorder %s146, %s162
    %p164 = scmp.eq.s32.totalorder %s18, 0
    %p165 = por %p163, %p164
    %p166 = scmp.le.s32.totalorder 1, %s12
    %p167 = scmp.lt.s32.totalorder %s12, 3
    %p168 = pnand %p166, %p167
    %p169 = pneg %p168
    // Predicated region
    $region9: #{dilated_conv_forward.2} parent=5 // pred_check
      _
    $region10: #{dilated_conv_forward.2} parent=5 // pred_check_branch
      %171 = sbr.rel (%p168) target = $region12
    $region11: #{dilated_conv_forward.2} parent=5 // pred_region
      %s172 = ssub.s32 %s12, 1
      // Predicated region
      $region13: #{dilated_conv_forward.2} parent=11 // pred_check
        %p173 = pneg %p59
      $region14: #{dilated_conv_forward.2} parent=11 // pred_check_branch
        %175 = sbr.rel (%p173) target = $region16
      $region15: #{dilated_conv_forward.2} parent=11 // pred_region
        _
      $region16: #{dilated_conv_forward.2} parent=11 // pred_fallthru
        _
      // Predicated region
      $region17: #{dilated_conv_forward.2} parent=11 // pred_check
        %p176 = pneg %p80
      $region18: #{dilated_conv_forward.2} parent=11 // pred_check_branch
        %178 = sbr.rel (%p176) target = $region20
      $region19: #{dilated_conv_forward.2} parent=11 // pred_region
        _
      $region20: #{dilated_conv_forward.2} parent=11 // pred_fallthru
        _
    $region12: #{dilated_conv_forward.2} parent=5 // pred_fallthru
      _
    %p179 = scmp.lt.s32.totalorder %s12, 2
    // Predicated region
    $region21: #{dilated_conv_forward.2} parent=5 // pred_check
      %p180 = pneg %p179
    $region22: #{dilated_conv_forward.2} parent=5 // pred_check_branch
      %182 = sbr.rel (%p180) target = $region24
    $region23: #{dilated_conv_forward.2} parent=5 // pred_region
      // Predicated region
      $region25: #{dilated_conv_forward.2} parent=23 // pred_check
        %p183 = pneg %p32
      $region26: #{dilated_conv_forward.2} parent=23 // pred_check_branch
        %185 = sbr.rel (%p183) target = $region28
      $region27: #{dilated_conv_forward.2} parent=23 // pred_region
        %p186 = scmp.lt.s32.totalorder %s12, 1
        %s187 = scalar_select %p186, %s12, 1
        %s188 = smul.addr %s187, 32
        %s189 = smul.addr %s188, 8
        %s190 = scalar_lea.vmem %s0, %s189
      $region28: #{dilated_conv_forward.2} parent=23 // pred_fallthru
        _
    $region24: #{dilated_conv_forward.2} parent=5 // pred_fallthru
      _
    %p191 = scmp.le.s32.totalorder 1, %s12
    %p192 = scmp.lt.s32.totalorder %s12, 3
    %p193 = pnand %p191, %p192
    %p194 = pneg %p193
    // Predicated region
    $region29: #{dilated_conv_forward.2} parent=5 // pred_check
      _
    $region30: #{dilated_conv_forward.2} parent=5 // pred_check_branch
      %196 = sbr.rel (%p193) target = $region32
    $region31: #{dilated_conv_forward.2} parent=5 // pred_region
      %s197 = ssub.s32 %s12, 1
      %p198 = scmp.lt.s32.totalorder %s17, 1
      %s199 = scalar_select %p198, %s17, 1
      %s200 = smul.addr %s199, 32
      %s201 = smul.addr %s200, 8
      %s202 = scalar_lea.vmem %s0, %s201
      %p203 = pneg %p38
      %p204 = pneg %p35
      %p205 = pneg %p59
      %p206 = pneg %p56
      %p207 = pneg %p80
      %p208 = pneg %p77
      %p209 = pneg %p106
      %p210 = pneg %p103
      %p211 = scmp.lt.s32.totalorder %s17, 1
      %s212 = scalar_select %p211, %s17, 1
      %s213 = smul.addr %s212, 2
      %s214 = smul.addr %s213, 8
      %s215 = scalar_lea.vmem %s3, %s214
      %p216 = pneg %p132
      %p217 = pneg %p129
      %p218 = scmp.lt.s32.totalorder %s17, 1
      %s219 = scalar_select %p218, %s17, 1
      %s220 = smul.addr %s219, 8
      %s221 = scalar_lea.vmem %s4, %s220
      %p222 = pneg %p158
      %p223 = pneg %p155
      %p224 = scmp.lt.s32.totalorder %s17, 1
      %s225 = scalar_select %p224, %s17, 1
      %s226 = smul.addr %s225, 8
      %s227 = scalar_lea.vmem %s5, %s226
      %p228 = scmp.lt.s32.totalorder %s17, 1
      %s229 = scalar_select %p228, %s17, 1
      %s230 = smul.addr %s229, 32
      %s231 = smul.addr %s230, 8
      %s232 = scalar_lea.vmem %s0, %s231
      %p233 = scmp.lt.s32.totalorder %s17, 1
      %s234 = scalar_select %p233, %s17, 1
      %s235 = smul.addr %s234, 2
      %s236 = smul.addr %s235, 8
      %s237 = scalar_lea.vmem %s3, %s236
      %p238 = scmp.lt.s32.totalorder %s17, 1
      %s239 = scalar_select %p238, %s17, 1
      %s240 = smul.addr %s239, 8
      %s241 = scalar_lea.vmem %s4, %s240
      %p242 = scmp.lt.s32.totalorder %s17, 1
      %s243 = scalar_select %p242, %s17, 1
      %s244 = smul.addr %s243, 8
      %s245 = scalar_lea.vmem %s5, %s244
      %vm246 = vcmask 31744
      %247 = vst.msk [vmem:[#allocation2] sm:$0xff] %vm246, 0.0
      %248 = vst.msk [vmem:[#allocation2 + $0x8] sm:$0xff] %vm246, 0.0
      %vm249 = vcmask 27648
      %250 = vst.msk [vmem:[#allocation2 + $0x10] sm:$0xf] %vm249, 0.0
      %251 = vst.msk [vmem:[#allocation2 + $0x18] sm:$0xff] %vm246, 0.0
      %252 = vst.msk [vmem:[#allocation2 + $0x20] sm:$0xff] %vm246, 0.0
      %253 = vst.msk [vmem:[#allocation2 + $0x28] sm:$0xf] %vm249, 0.0
      %254 = vst.msk [vmem:[#allocation2 + $0x30] sm:$0xff] %vm246, 0.0
      %255 = vst.msk [vmem:[#allocation2 + $0x38] sm:$0xff] %vm246, 0.0
      %256 = vst.msk [vmem:[#allocation2 + $0x40] sm:$0xf] %vm249, 0.0
      %257 = vst.msk [vmem:[#allocation2 + $0x48] sm:$0xff] %vm246, 0.0
      %258 = vst.msk [vmem:[#allocation2 + $0x50] sm:$0xff] %vm246, 0.0
      %259 = vst.msk [vmem:[#allocation2 + $0x58] sm:$0xf] %vm249, 0.0
      %260 = vst.msk [vmem:[#allocation2 + $0x60] sm:$0xff] %vm246, 0.0
      %261 = vst.msk [vmem:[#allocation2 + $0x68] sm:$0xff] %vm246, 0.0
      %262 = vst.msk [vmem:[#allocation2 + $0x70] sm:$0xf] %vm249, 0.0
      %263 = vst.msk [vmem:[#allocation2 + $0x78] sm:$0xff] %vm246, 0.0
      %264 = vst.msk [vmem:[#allocation2 + $0x80] sm:$0xff] %vm246, 0.0
      %265 = vst.msk [vmem:[#allocation2 + $0x88] sm:$0xf] %vm249, 0.0
      %266 = vst.msk [vmem:[#allocation2 + $0x90] sm:$0xff] %vm246, 0.0
      %267 = vst.msk [vmem:[#allocation2 + $0x98] sm:$0xff] %vm246, 0.0
      %268 = vst.msk [vmem:[#allocation2 + $0xa0] sm:$0xf] %vm249, 0.0
      %269 = vst.msk [vmem:[#allocation2 + $0xa8] sm:$0xff] %vm246, 0.0
      %270 = vst.msk [vmem:[#allocation2 + $0xb0] sm:$0xff] %vm246, 0.0
      %271 = vst.msk [vmem:[#allocation2 + $0xb8] sm:$0xf] %vm249, 0.0
      %272 = vst.msk [vmem:[#allocation2 + $0xc0] sm:$0xff] %vm246, 0.0
      %273 = vst.msk [vmem:[#allocation2 + $0xc8] sm:$0xff] %vm246, 0.0
      %274 = vst.msk [vmem:[#allocation2 + $0xd0] sm:$0xf] %vm249, 0.0
      %275 = vst.msk [vmem:[#allocation2 + $0xd8] sm:$0xff] %vm246, 0.0
      %276 = vst.msk [vmem:[#allocation2 + $0xe0] sm:$0xff] %vm246, 0.0
      %277 = vst.msk [vmem:[#allocation2 + $0xe8] sm:$0xf] %vm249, 0.0
      %278 = vst.msk [vmem:[#allocation2 + $0xf0] sm:$0xff] %vm246, 0.0
      %279 = vst.msk [vmem:[#allocation2 + $0xf8] sm:$0xff] %vm246, 0.0
      %280 = vst.msk [vmem:[#allocation2 + $0x100] sm:$0xf] %vm249, 0.0
      %281 = vst.msk [vmem:[#allocation2 + $0x108] sm:$0xff] %vm246, 0.0
      %282 = vst.msk [vmem:[#allocation2 + $0x110] sm:$0xff] %vm246, 0.0
      %283 = vst.msk [vmem:[#allocation2 + $0x118] sm:$0xf] %vm249, 0.0
      %284 = vst.msk [vmem:[#allocation2 + $0x120] sm:$0xff] %vm246, 0.0
      %285 = vst.msk [vmem:[#allocation2 + $0x128] sm:$0xff] %vm246, 0.0
      %286 = vst.msk [vmem:[#allocation2 + $0x130] sm:$0xf] %vm249, 0.0
      %287 = vst.msk [vmem:[#allocation2 + $0x138] sm:$0xff] %vm246, 0.0
      %288 = vst.msk [vmem:[#allocation2 + $0x140] sm:$0xff] %vm246, 0.0
      %289 = vst.msk [vmem:[#allocation2 + $0x148] sm:$0xf] %vm249, 0.0
      %290 = vst.msk [vmem:[#allocation2 + $0x150] sm:$0xff] %vm246, 0.0
      %291 = vst.msk [vmem:[#allocation2 + $0x158] sm:$0xff] %vm246, 0.0
      %292 = vst.msk [vmem:[#allocation2 + $0x160] sm:$0xf] %vm249, 0.0
      %293 = vst.msk [vmem:[#allocation2 + $0x168] sm:$0xff] %vm246, 0.0
      %294 = vst.msk [vmem:[#allocation2 + $0x170] sm:$0xff] %vm246, 0.0
      %295 = vst.msk [vmem:[#allocation2 + $0x178] sm:$0xf] %vm249, 0.0
      %296 = vst.msk [vmem:[#allocation2 + $0x180] sm:$0xff] %vm246, 0.0
      %297 = vst.msk [vmem:[#allocation2 + $0x188] sm:$0xff] %vm246, 0.0
      %298 = vst.msk [vmem:[#allocation2 + $0x190] sm:$0xf] %vm249, 0.0
      %299 = vst.msk [vmem:[#allocation2 + $0x198] sm:$0xff] %vm246, 0.0
      %300 = vst.msk [vmem:[#allocation2 + $0x1a0] sm:$0xff] %vm246, 0.0
      %301 = vst.msk [vmem:[#allocation2 + $0x1a8] sm:$0xf] %vm249, 0.0
      %302 = vst.msk [vmem:[#allocation2 + $0x1b0] sm:$0xff] %vm246, 0.0
      %303 = vst.msk [vmem:[#allocation2 + $0x1b8] sm:$0xff] %vm246, 0.0
      %304 = vst.msk [vmem:[#allocation2 + $0x1c0] sm:$0xf] %vm249, 0.0
      %305 = vst.msk [vmem:[#allocation2 + $0x1c8] sm:$0xff] %vm246, 0.0
      %306 = vst.msk [vmem:[#allocation2 + $0x1d0] sm:$0xff] %vm246, 0.0
      %307 = vst.msk [vmem:[#allocation2 + $0x1d8] sm:$0xf] %vm249, 0.0
      %v308 = vld [vmem:[%s232] sm:$0xff]
      %v309 = vld [vmem:[%s232 + $0x8] sm:$0xff]
      %v310 = vld [vmem:[%s232 + $0x10] sm:$0xff]
      %v311 = vld [vmem:[%s232 + $0x18] sm:$0xff]
      %v312 = vld [vmem:[%s232 + $0x20] sm:$0xff]
      %v313 = vld [vmem:[%s232 + $0x28] sm:$0xff]
      %v314 = vld [vmem:[%s232 + $0x30] sm:$0xff]
      %v315 = vld [vmem:[%s232 + $0x38] sm:$0xff]
      %v316 = vld [vmem:[%s232 + $0x40] sm:$0xff]
      %v317 = vld [vmem:[%s232 + $0x48] sm:$0xff]
      %v318 = vld [vmem:[%s232 + $0x50] sm:$0xff]
      %v319 = vld [vmem:[%s232 + $0x58] sm:$0xff]
      %v320 = vld [vmem:[%s232 + $0x60] sm:$0xff]
      %v321 = vld [vmem:[%s232 + $0x68] sm:$0xff]
      %v322 = vld [vmem:[%s232 + $0x70] sm:$0xff]
      %v323 = vld [vmem:[%s232 + $0x78] sm:$0xff]
      %v324 = vld [vmem:[%s232 + $0x80] sm:$0xff]
      %v325 = vld [vmem:[%s232 + $0x88] sm:$0xff]
      %v326 = vld [vmem:[%s232 + $0x90] sm:$0xff]
      %v327 = vld [vmem:[%s232 + $0x98] sm:$0xff]
      %v328 = vld [vmem:[%s232 + $0xa0] sm:$0xff]
      %v329 = vld [vmem:[%s232 + $0xa8] sm:$0xff]
      %v330 = vld [vmem:[%s232 + $0xb0] sm:$0xff]
      %v331 = vld [vmem:[%s232 + $0xb8] sm:$0xff]
      %v332 = vld [vmem:[%s232 + $0xc0] sm:$0xff]
      %v333 = vld [vmem:[%s232 + $0xc8] sm:$0xff]
      %v334 = vld [vmem:[%s232 + $0xd0] sm:$0xff]
      %v335 = vld [vmem:[%s232 + $0xd8] sm:$0xff]
      %v336 = vld [vmem:[%s232 + $0xe0] sm:$0xff]
      %v337 = vld [vmem:[%s232 + $0xe8] sm:$0xff]
      %v338 = vld [vmem:[%s232 + $0xf0] sm:$0xff]
      %v339 = vld [vmem:[%s232 + $0xf8] sm:$0xff]
      %v340 = vmax.f32 %v308, 0.0
      %v341 = vmax.f32 %v309, 0.0
      %v342 = vmax.f32 %v310, 0.0
      %v343 = vmax.f32 %v311, 0.0
      %v344 = vmax.f32 %v312, 0.0
      %v345 = vmax.f32 %v313, 0.0
      %v346 = vmax.f32 %v314, 0.0
      %v347 = vmax.f32 %v315, 0.0
      %v348 = vmax.f32 %v316, 0.0
      %v349 = vmax.f32 %v317, 0.0
      %v350 = vmax.f32 %v318, 0.0
      %v351 = vmax.f32 %v319, 0.0
      %v352 = vmax.f32 %v320, 0.0
      %v353 = vmax.f32 %v321, 0.0
      %v354 = vmax.f32 %v322, 0.0
      %v355 = vmax.f32 %v323, 0.0
      %v356 = vmax.f32 %v324, 0.0
      %v357 = vmax.f32 %v325, 0.0
      %v358 = vmax.f32 %v326, 0.0
      %v359 = vmax.f32 %v327, 0.0
      %v360 = vmax.f32 %v328, 0.0
      %v361 = vmax.f32 %v329, 0.0
      %v362 = vmax.f32 %v330, 0.0
      %v363 = vmax.f32 %v331, 0.0
      %v364 = vmax.f32 %v332, 0.0
      %v365 = vmax.f32 %v333, 0.0
      %v366 = vmax.f32 %v334, 0.0
      %v367 = vmax.f32 %v335, 0.0
      %v368 = vmax.f32 %v336, 0.0
      %v369 = vmax.f32 %v337, 0.0
      %v370 = vmax.f32 %v338, 0.0
      %v371 = vmax.f32 %v339, 0.0
      %s372 = scalar_lea.vmem [#allocation2], 48
      %373 = vst.msk [vmem:[%s372 + $0x2] sm:$0xff] %vm246, %v340
      %374 = vst.msk [vmem:[%s372 + $0xa] sm:$0xff] %vm246, %v341
      %375 = vst.msk [vmem:[%s372 + $0x1a] sm:$0xff] %vm246, %v342
      %376 = vst.msk [vmem:[%s372 + $0x22] sm:$0xff] %vm246, %v343
      %377 = vst.msk [vmem:[%s372 + $0x32] sm:$0xff] %vm246, %v344
      %378 = vst.msk [vmem:[%s372 + $0x3a] sm:$0xff] %vm246, %v345
      %379 = vst.msk [vmem:[%s372 + $0x4a] sm:$0xff] %vm246, %v346
      %380 = vst.msk [vmem:[%s372 + $0x52] sm:$0xff] %vm246, %v347
      %381 = vst.msk [vmem:[%s372 + $0x62] sm:$0xff] %vm246, %v348
      %382 = vst.msk [vmem:[%s372 + $0x6a] sm:$0xff] %vm246, %v349
      %383 = vst.msk [vmem:[%s372 + $0x7a] sm:$0xff] %vm246, %v350
      %384 = vst.msk [vmem:[%s372 + $0x82] sm:$0xff] %vm246, %v351
      %385 = vst.msk [vmem:[%s372 + $0x92] sm:$0xff] %vm246, %v352
      %386 = vst.msk [vmem:[%s372 + $0x9a] sm:$0xff] %vm246, %v353
      %387 = vst.msk [vmem:[%s372 + $0xaa] sm:$0xff] %vm246, %v354
      %388 = vst.msk [vmem:[%s372 + $0xb2] sm:$0xff] %vm246, %v355
      %389 = vst.msk [vmem:[%s372 + $0xc2] sm:$0xff] %vm246, %v356
      %390 = vst.msk [vmem:[%s372 + $0xca] sm:$0xff] %vm246, %v357
      %391 = vst.msk [vmem:[%s372 + $0xda] sm:$0xff] %vm246, %v358
      %392 = vst.msk [vmem:[%s372 + $0xe2] sm:$0xff] %vm246, %v359
      %393 = vst.msk [vmem:[%s372 + $0xf2] sm:$0xff] %vm246, %v360
      %394 = vst.msk [vmem:[%s372 + $0xfa] sm:$0xff] %vm246, %v361
      %395 = vst.msk [vmem:[%s372 + $0x10a] sm:$0xff] %vm246, %v362
      %396 = vst.msk [vmem:[%s372 + $0x112] sm:$0xff] %vm246, %v363
      %397 = vst.msk [vmem:[%s372 + $0x122] sm:$0xff] %vm246, %v364
      %398 = vst.msk [vmem:[%s372 + $0x12a] sm:$0xff] %vm246, %v365
      %399 = vst.msk [vmem:[%s372 + $0x13a] sm:$0xff] %vm246, %v366
      %400 = vst.msk [vmem:[%s372 + $0x142] sm:$0xff] %vm246, %v367
      %401 = vst.msk [vmem:[%s372 + $0x152] sm:$0xff] %vm246, %v368
      %402 = vst.msk [vmem:[%s372 + $0x15a] sm:$0xff] %vm246, %v369
      %403 = vst.msk [vmem:[%s372 + $0x16a] sm:$0xff] %vm246, %v370
      %404 = vst.msk [vmem:[%s372 + $0x172] sm:$0xff] %vm246, %v371
      %v405 = vld [vmem:[#allocation2] sm:$0xff]
      %v406 = vld [vmem:[#allocation2 + $0x8] sm:$0xff]
      %v407 = vld [vmem:[#allocation2 + $0x10] sm:$0xf]
      %v408 = vld [vmem:[#allocation2 + $0x18] sm:$0xff]
      %v409 = vld [vmem:[#allocation2 + $0x20] sm:$0xff]
      %v410 = vld [vmem:[#allocation2 + $0x28] sm:$0xf]
      %v411 = vld [vmem:[#allocation2 + $0x30] sm:$0xff]
      %v412 = vld [vmem:[#allocation2 + $0x38] sm:$0xff]
      %v413 = vld [vmem:[#allocation2 + $0x40] sm:$0xf]
      %v414 = vld [vmem:[#allocation2 + $0x48] sm:$0xff]
      %v415 = vld [vmem:[#allocation2 + $0x50] sm:$0xff]
      %v416 = vld [vmem:[#allocation2 + $0x58] sm:$0xf]
      %v417 = vld [vmem:[#allocation2 + $0x60] sm:$0xff]
      %v418 = vld [vmem:[#allocation2 + $0x68] sm:$0xff]
      %v419 = vld [vmem:[#allocation2 + $0x70] sm:$0xf]
      %v420 = vld [vmem:[#allocation2 + $0x78] sm:$0xff]
      %v421 = vld [vmem:[#allocation2 + $0x80] sm:$0xff]
      %v422 = vld [vmem:[#allocation2 + $0x88] sm:$0xf]
      %v423 = vld [vmem:[#allocation2 + $0x90] sm:$0xff]
      %v424 = vld [vmem:[#allocation2 + $0x98] sm:$0xff]
      %v425 = vld [vmem:[#allocation2 + $0xa0] sm:$0xf]
      %v426 = vld [vmem:[#allocation2 + $0xa8] sm:$0xff]
      %v427 = vld [vmem:[#allocation2 + $0xb0] sm:$0xff]
      %v428 = vld [vmem:[#allocation2 + $0xb8] sm:$0xf]
      %v429 = vld [vmem:[#allocation2 + $0xc0] sm:$0xff]
      %v430 = vld [vmem:[#allocation2 + $0xc8] sm:$0xff]
      %v431 = vld [vmem:[#allocation2 + $0xd0] sm:$0xf]
      %v432 = vld [vmem:[#allocation2 + $0xd8] sm:$0xff]
      %v433 = vld [vmem:[#allocation2 + $0xe0] sm:$0xff]
      %v434 = vld [vmem:[#allocation2 + $0xe8] sm:$0xf]
      %v435 = vld [vmem:[#allocation2 + $0xf0] sm:$0xff]
      %v436 = vld [vmem:[#allocation2 + $0xf8] sm:$0xff]
      %v437 = vld [vmem:[#allocation2 + $0x100] sm:$0xf]
      %v438 = vld [vmem:[#allocation2 + $0x108] sm:$0xff]
      %v439 = vld [vmem:[#allocation2 + $0x110] sm:$0xff]
      %v440 = vld [vmem:[#allocation2 + $0x118] sm:$0xf]
      %v441 = vld [vmem:[#allocation2 + $0x120] sm:$0xff]
      %v442 = vld [vmem:[#allocation2 + $0x128] sm:$0xff]
      %v443 = vld [vmem:[#allocation2 + $0x130] sm:$0xf]
      %v444 = vld [vmem:[#allocation2 + $0x138] sm:$0xff]
      %v445 = vld [vmem:[#allocation2 + $0x140] sm:$0xff]
      %v446 = vld [vmem:[#allocation2 + $0x148] sm:$0xf]
      %v447 = vld [vmem:[#allocation2 + $0x150] sm:$0xff]
      %v448 = vld [vmem:[#allocation2 + $0x158] sm:$0xff]
      %v449 = vld [vmem:[#allocation2 + $0x160] sm:$0xf]
      %v450 = vld [vmem:[#allocation2 + $0x168] sm:$0xff]
      %v451 = vld [vmem:[#allocation2 + $0x170] sm:$0xff]
      %v452 = vld [vmem:[#allocation2 + $0x178] sm:$0xf]
      %v453 = vld [vmem:[#allocation2 + $0x180] sm:$0xff]
      %v454 = vld [vmem:[#allocation2 + $0x188] sm:$0xff]
      %v455 = vld [vmem:[#allocation2 + $0x190] sm:$0xf]
      %v456 = vld [vmem:[#allocation2 + $0x198] sm:$0xff]
      %v457 = vld [vmem:[#allocation2 + $0x1a0] sm:$0xff]
      %v458 = vld [vmem:[#allocation2 + $0x1a8] sm:$0xf]
      %v459 = vld [vmem:[#allocation2 + $0x1b0] sm:$0xff]
      %v460 = vld [vmem:[#allocation2 + $0x1b8] sm:$0xff]
      %v461 = vld [vmem:[#allocation2 + $0x1c0] sm:$0xf]
      %v462 = vld [vmem:[#allocation2 + $0x1c8] sm:$0xff]
      %v463 = vld [vmem:[#allocation2 + $0x1d0] sm:$0xff]
      %v464 = vld [vmem:[#allocation2 + $0x1d8] sm:$0xf]
      %465 = vst.msk [vmem:[#allocation3] sm:$0xff] %vm246, %v405
      %466 = vst.msk [vmem:[#allocation3 + $0x8] sm:$0xff] %vm246, %v406
      %467 = vst.msk [vmem:[#allocation3 + $0x10] sm:$0xff] %vm246, %v408
      %468 = vst.msk [vmem:[#allocation3 + $0x18] sm:$0xff] %vm246, %v409
      %469 = vst.msk [vmem:[#allocation3 + $0x20] sm:$0xff] %vm246, %v411
      %470 = vst.msk [vmem:[#allocation3 + $0x28] sm:$0xff] %vm246, %v412
      %471 = vst.msk [vmem:[#allocation3 + $0x30] sm:$0xff] %vm246, %v414
      %472 = vst.msk [vmem:[#allocation3 + $0x38] sm:$0xff] %vm246, %v415
      %473 = vst.msk [vmem:[#allocation3 + $0x40] sm:$0xff] %vm246, %v417
      %474 = vst.msk [vmem:[#allocation3 + $0x48] sm:$0xff] %vm246, %v418
      %475 = vst.msk [vmem:[#allocation3 + $0x50] sm:$0xff] %vm246, %v420
      %476 = vst.msk [vmem:[#allocation3 + $0x58] sm:$0xff] %vm246, %v421
      %477 = vst.msk [vmem:[#allocation3 + $0x60] sm:$0xff] %vm246, %v423
      %478 = vst.msk [vmem:[#allocation3 + $0x68] sm:$0xff] %vm246, %v424
      %479 = vst.msk [vmem:[#allocation3 + $0x70] sm:$0xff] %vm246, %v426
      %480 = vst.msk [vmem:[#allocation3 + $0x78] sm:$0xff] %vm246, %v427
      %481 = vst.msk [vmem:[#allocation3 + $0x80] sm:$0xff] %vm246, %v429
      %482 = vst.msk [vmem:[#allocation3 + $0x88] sm:$0xff] %vm246, %v430
      %483 = vst.msk [vmem:[#allocation3 + $0x90] sm:$0xff] %vm246, %v432
      %484 = vst.msk [vmem:[#allocation3 + $0x98] sm:$0xff] %vm246, %v433
      %485 = vst.msk [vmem:[#allocation3 + $0xa0] sm:$0xff] %vm246, %v435
      %486 = vst.msk [vmem:[#allocation3 + $0xa8] sm:$0xff] %vm246, %v436
      %487 = vst.msk [vmem:[#allocation3 + $0xb0] sm:$0xff] %vm246, %v438
      %488 = vst.msk [vmem:[#allocation3 + $0xb8] sm:$0xff] %vm246, %v439
      %489 = vst.msk [vmem:[#allocation3 + $0xc0] sm:$0xff] %vm246, %v441
      %490 = vst.msk [vmem:[#allocation3 + $0xc8] sm:$0xff] %vm246, %v442
      %491 = vst.msk [vmem:[#allocation3 + $0xd0] sm:$0xff] %vm246, %v444
      %492 = vst.msk [vmem:[#allocation3 + $0xd8] sm:$0xff] %vm246, %v445
      %493 = vst.msk [vmem:[#allocation3 + $0xe0] sm:$0xff] %vm246, %v447
      %494 = vst.msk [vmem:[#allocation3 + $0xe8] sm:$0xff] %vm246, %v448
      %495 = vst.msk [vmem:[#allocation3 + $0xf0] sm:$0xff] %vm246, %v450
      %496 = vst.msk [vmem:[#allocation3 + $0xf8] sm:$0xff] %vm246, %v451
      %vm545 = vcmask 1045504
      %v546 = vrot.slane %v405, 2
      %v547 = vrot.slane %v406, 2
      %v548 = vsel %vm545, %v546, %v547
      %v549 = vrot.slane %v407, 2
      %v550 = vsel %vm545, %v547, %v549
      %v551 = vrot.slane %v408, 2
      %v552 = vrot.slane %v409, 2
      %v553 = vsel %vm545, %v551, %v552
      %v554 = vrot.slane %v410, 2
      %v555 = vsel %vm545, %v552, %v554
      %v556 = vrot.slane %v411, 2
      %v557 = vrot.slane %v412, 2
      %v558 = vsel %vm545, %v556, %v557
      %v559 = vrot.slane %v413, 2
      %v560 = vsel %vm545, %v557, %v559
      %v561 = vrot.slane %v414, 2
      %v562 = vrot.slane %v415, 2
      %v563 = vsel %vm545, %v561, %v562
      %v564 = vrot.slane %v416, 2
      %v565 = vsel %vm545, %v562, %v564
      %v566 = vrot.slane %v417, 2
      %v567 = vrot.slane %v418, 2
      %v568 = vsel %vm545, %v566, %v567
      %v569 = vrot.slane %v419, 2
      %v570 = vsel %vm545, %v567, %v569
      %v571 = vrot.slane %v420, 2
      %v572 = vrot.slane %v421, 2
      %v573 = vsel %vm545, %v571, %v572
      %v574 = vrot.slane %v422, 2
      %v575 = vsel %vm545, %v572, %v574
      %v576 = vrot.slane %v423, 2
      %v577 = vrot.slane %v424, 2
      %v578 = vsel %vm545, %v576, %v577
      %v579 = vrot.slane %v425, 2
      %v580 = vsel %vm545, %v577, %v579
      %v581 = vrot.slane %v426, 2
      %v582 = vrot.slane %v427, 2
      %v583 = vsel %vm545, %v581, %v582
      %v584 = vrot.slane %v428, 2
      %v585 = vsel %vm545, %v582, %v584
      %v586 = vrot.slane %v429, 2
      %v587 = vrot.slane %v430, 2
      %v588 = vsel %vm545, %v586, %v587
      %v589 = vrot.slane %v431, 2
      %v590 = vsel %vm545, %v587, %v589
      %v591 = vrot.slane %v432, 2
      %v592 = vrot.slane %v433, 2
      %v593 = vsel %vm545, %v591, %v592
      %v594 = vrot.slane %v434, 2
      %v595 = vsel %vm545, %v592, %v594
      %v596 = vrot.slane %v435, 2
      %v597 = vrot.slane %v436, 2
      %v598 = vsel %vm545, %v596, %v597
      %v599 = vrot.slane %v437, 2
      %v600 = vsel %vm545, %v597, %v599
      %v601 = vrot.slane %v438, 2
      %v602 = vrot.slane %v439, 2
      %v603 = vsel %vm545, %v601, %v602
      %v604 = vrot.slane %v440, 2
      %v605 = vsel %vm545, %v602, %v604
      %v606 = vrot.slane %v441, 2
      %v607 = vrot.slane %v442, 2
      %v608 = vsel %vm545, %v606, %v607
      %v609 = vrot.slane %v443, 2
      %v610 = vsel %vm545, %v607, %v609
      %v611 = vrot.slane %v444, 2
      %v612 = vrot.slane %v445, 2
      %v613 = vsel %vm545, %v611, %v612
      %v614 = vrot.slane %v446, 2
      %v615 = vsel %vm545, %v612, %v614
      %v616 = vrot.slane %v447, 2
      %v617 = vrot.slane %v448, 2
      %v618 = vsel %vm545, %v616, %v617
      %v619 = vrot.slane %v449, 2
      %v620 = vsel %vm545, %v617, %v619
      %v621 = vrot.slane %v450, 2
      %v622 = vrot.slane %v451, 2
      %v623 = vsel %vm545, %v621, %v622
      %v624 = vrot.slane %v452, 2
      %v625 = vsel %vm545, %v622, %v624
      %626 = vrot.lane.b32.xlu0 %v548, 4
      %v627 = vpop.permute.xlu0 %626
      %628 = vrot.lane.b32.xlu0 %v550, 4
      %v629 = vpop.permute.xlu0 %628
      %630 = vrot.lane.b32.xlu0 %v553, 4
      %v631 = vpop.permute.xlu0 %630
      %632 = vrot.lane.b32.xlu0 %v555, 4
      %v633 = vpop.permute.xlu0 %632
      %634 = vrot.lane.b32.xlu0 %v558, 4
      %v635 = vpop.permute.xlu0 %634
      %636 = vrot.lane.b32.xlu0 %v560, 4
      %v637 = vpop.permute.xlu0 %636
      %638 = vrot.lane.b32.xlu0 %v563, 4
      %v639 = vpop.permute.xlu0 %638
      %640 = vrot.lane.b32.xlu0 %v565, 4
      %v641 = vpop.permute.xlu0 %640
      %642 = vrot.lane.b32.xlu0 %v568, 4
      %v643 = vpop.permute.xlu0 %642
      %644 = vrot.lane.b32.xlu0 %v570, 4
      %v645 = vpop.permute.xlu0 %644
      %646 = vrot.lane.b32.xlu0 %v573, 4
      %v647 = vpop.permute.xlu0 %646
      %648 = vrot.lane.b32.xlu0 %v575, 4
      %v649 = vpop.permute.xlu0 %648
      %650 = vrot.lane.b32.xlu0 %v578, 4
      %v651 = vpop.permute.xlu0 %650
      %652 = vrot.lane.b32.xlu0 %v580, 4
      %v653 = vpop.permute.xlu0 %652
      %654 = vrot.lane.b32.xlu0 %v583, 4
      %v655 = vpop.permute.xlu0 %654
      %656 = vrot.lane.b32.xlu0 %v585, 4
      %v657 = vpop.permute.xlu0 %656
      %658 = vrot.lane.b32.xlu0 %v588, 4
      %v659 = vpop.permute.xlu0 %658
      %660 = vrot.lane.b32.xlu0 %v590, 4
      %v661 = vpop.permute.xlu0 %660
      %662 = vrot.lane.b32.xlu0 %v593, 4
      %v663 = vpop.permute.xlu0 %662
      %664 = vrot.lane.b32.xlu0 %v595, 4
      %v665 = vpop.permute.xlu0 %664
      %666 = vrot.lane.b32.xlu0 %v598, 4
      %v667 = vpop.permute.xlu0 %666
      %668 = vrot.lane.b32.xlu0 %v600, 4
      %v669 = vpop.permute.xlu0 %668
      %670 = vrot.lane.b32.xlu0 %v603, 4
      %v671 = vpop.permute.xlu0 %670
      %672 = vrot.lane.b32.xlu0 %v605, 4
      %v673 = vpop.permute.xlu0 %672
      %674 = vrot.lane.b32.xlu0 %v608, 4
      %v675 = vpop.permute.xlu0 %674
      %676 = vrot.lane.b32.xlu0 %v610, 4
      %v677 = vpop.permute.xlu0 %676
      %678 = vrot.lane.b32.xlu0 %v613, 4
      %v679 = vpop.permute.xlu0 %678
      %680 = vrot.lane.b32.xlu0 %v615, 4
      %v681 = vpop.permute.xlu0 %680
      %682 = vrot.lane.b32.xlu0 %v618, 4
      %v683 = vpop.permute.xlu0 %682
      %684 = vrot.lane.b32.xlu0 %v620, 4
      %v685 = vpop.permute.xlu0 %684
      %686 = vrot.lane.b32.xlu0 %v623, 4
      %v687 = vpop.permute.xlu0 %686
      %688 = vrot.lane.b32.xlu0 %v625, 4
      %v689 = vpop.permute.xlu0 %688
      %vm722 = vcmask 64544
      %723 = vst.msk [vmem:[#allocation3] sm:$0xff] %vm722, %v627
      %724 = vst.msk [vmem:[#allocation3 + $0x8] sm:$0xff] %vm722, %v629
      %725 = vst.msk [vmem:[#allocation3 + $0x10] sm:$0xff] %vm722, %v631
      %726 = vst.msk [vmem:[#allocation3 + $0x18] sm:$0xff] %vm722, %v633
      %727 = vst.msk [vmem:[#allocation3 + $0x20] sm:$0xff] %vm722, %v635
      %728 = vst.msk [vmem:[#allocation3 + $0x28] sm:$0xff] %vm722, %v637
      %729 = vst.msk [vmem:[#allocation3 + $0x30] sm:$0xff] %vm722, %v639
      %730 = vst.msk [vmem:[#allocation3 + $0x38] sm:$0xff] %vm722, %v641
      %731 = vst.msk [vmem:[#allocation3 + $0x40] sm:$0xff] %vm722, %v643
      %732 = vst.msk [vmem:[#allocation3 + $0x48] sm:$0xff] %vm722, %v645
      %733 = vst.msk [vmem:[#allocation3 + $0x50] sm:$0xff] %vm722, %v647
      %734 = vst.msk [vmem:[#allocation3 + $0x58] sm:$0xff] %vm722, %v649
      %735 = vst.msk [vmem:[#allocation3 + $0x60] sm:$0xff] %vm722, %v651
      %736 = vst.msk [vmem:[#allocation3 + $0x68] sm:$0xff] %vm722, %v653
      %737 = vst.msk [vmem:[#allocation3 + $0x70] sm:$0xff] %vm722, %v655
      %738 = vst.msk [vmem:[#allocation3 + $0x78] sm:$0xff] %vm722, %v657
      %739 = vst.msk [vmem:[#allocation3 + $0x80] sm:$0xff] %vm722, %v659
      %740 = vst.msk [vmem:[#allocation3 + $0x88] sm:$0xff] %vm722, %v661
      %741 = vst.msk [vmem:[#allocation3 + $0x90] sm:$0xff] %vm722, %v663
      %742 = vst.msk [vmem:[#allocation3 + $0x98] sm:$0xff] %vm722, %v665
      %743 = vst.msk [vmem:[#allocation3 + $0xa0] sm:$0xff] %vm722, %v667
      %744 = vst.msk [vmem:[#allocation3 + $0xa8] sm:$0xff] %vm722, %v669
      %745 = vst.msk [vmem:[#allocation3 + $0xb0] sm:$0xff] %vm722, %v671
      %746 = vst.msk [vmem:[#allocation3 + $0xb8] sm:$0xff] %vm722, %v673
      %747 = vst.msk [vmem:[#allocation3 + $0xc0] sm:$0xff] %vm722, %v675
      %748 = vst.msk [vmem:[#allocation3 + $0xc8] sm:$0xff] %vm722, %v677
      %749 = vst.msk [vmem:[#allocation3 + $0xd0] sm:$0xff] %vm722, %v679
      %750 = vst.msk [vmem:[#allocation3 + $0xd8] sm:$0xff] %vm722, %v681
      %751 = vst.msk [vmem:[#allocation3 + $0xe0] sm:$0xff] %vm722, %v683
      %752 = vst.msk [vmem:[#allocation3 + $0xe8] sm:$0xff] %vm722, %v685
      %753 = vst.msk [vmem:[#allocation3 + $0xf0] sm:$0xff] %vm722, %v687
      %754 = vst.msk [vmem:[#allocation3 + $0xf8] sm:$0xff] %vm722, %v689
      %vm755 = vcmask 1043456
      %v756 = vrot.slane %v405, 4
      %v757 = vrot.slane %v406, 4
      %v758 = vsel %vm755, %v756, %v757
      %v759 = vrot.slane %v407, 4
      %v760 = vsel %vm755, %v757, %v759
      %v761 = vrot.slane %v408, 4
      %v762 = vrot.slane %v409, 4
      %v763 = vsel %vm755, %v761, %v762
      %v764 = vrot.slane %v410, 4
      %v765 = vsel %vm755, %v762, %v764
      %v766 = vrot.slane %v411, 4
      %v767 = vrot.slane %v412, 4
      %v768 = vsel %vm755, %v766, %v767
      %v769 = vrot.slane %v413, 4
      %v770 = vsel %vm755, %v767, %v769
      %v771 = vrot.slane %v414, 4
      %v772 = vrot.slane %v415, 4
      %v773 = vsel %vm755, %v771, %v772
      %v774 = vrot.slane %v416, 4
      %v775 = vsel %vm755, %v772, %v774
      %v776 = vrot.slane %v417, 4
      %v777 = vrot.slane %v418, 4
      %v778 = vsel %vm755, %v776, %v777
      %v779 = vrot.slane %v419, 4
      %v780 = vsel %vm755, %v777, %v779
      %v781 = vrot.slane %v420, 4
      %v782 = vrot.slane %v421, 4
      %v783 = vsel %vm755, %v781, %v782
      %v784 = vrot.slane %v422, 4
      %v785 = vsel %vm755, %v782, %v784
      %v786 = vrot.slane %v423, 4
      %v787 = vrot.slane %v424, 4
      %v788 = vsel %vm755, %v786, %v787
      %v789 = vrot.slane %v425, 4
      %v790 = vsel %vm755, %v787, %v789
      %v791 = vrot.slane %v426, 4
      %v792 = vrot.slane %v427, 4
      %v793 = vsel %vm755, %v791, %v792
      %v794 = vrot.slane %v428, 4
      %v795 = vsel %vm755, %v792, %v794
      %v796 = vrot.slane %v429, 4
      %v797 = vrot.slane %v430, 4
      %v798 = vsel %vm755, %v796, %v797
      %v799 = vrot.slane %v431, 4
      %v800 = vsel %vm755, %v797, %v799
      %v801 = vrot.slane %v432, 4
      %v802 = vrot.slane %v433, 4
      %v803 = vsel %vm755, %v801, %v802
      %v804 = vrot.slane %v434, 4
      %v805 = vsel %vm755, %v802, %v804
      %v806 = vrot.slane %v435, 4
      %v807 = vrot.slane %v436, 4
      %v808 = vsel %vm755, %v806, %v807
      %v809 = vrot.slane %v437, 4
      %v810 = vsel %vm755, %v807, %v809
      %v811 = vrot.slane %v438, 4
      %v812 = vrot.slane %v439, 4
      %v813 = vsel %vm755, %v811, %v812
      %v814 = vrot.slane %v440, 4
      %v815 = vsel %vm755, %v812, %v814
      %v816 = vrot.slane %v441, 4
      %v817 = vrot.slane %v442, 4
      %v818 = vsel %vm755, %v816, %v817
      %v819 = vrot.slane %v443, 4
      %v820 = vsel %vm755, %v817, %v819
      %v821 = vrot.slane %v444, 4
      %v822 = vrot.slane %v445, 4
      %v823 = vsel %vm755, %v821, %v822
      %v824 = vrot.slane %v446, 4
      %v825 = vsel %vm755, %v822, %v824
      %v826 = vrot.slane %v447, 4
      %v827 = vrot.slane %v448, 4
      %v828 = vsel %vm755, %v826, %v827
      %v829 = vrot.slane %v449, 4
      %v830 = vsel %vm755, %v827, %v829
      %v831 = vrot.slane %v450, 4
      %v832 = vrot.slane %v451, 4
      %v833 = vsel %vm755, %v831, %v832
      %v834 = vrot.slane %v452, 4
      %v835 = vsel %vm755, %v832, %v834
      %836 = vrot.lane.b32.xlu0 %v758, 8
      %v837 = vpop.permute.xlu0 %836
      %838 = vrot.lane.b32.xlu0 %v760, 8
      %v839 = vpop.permute.xlu0 %838
      %840 = vrot.lane.b32.xlu0 %v763, 8
      %v841 = vpop.permute.xlu0 %840
      %842 = vrot.lane.b32.xlu0 %v765, 8
      %v843 = vpop.permute.xlu0 %842
      %844 = vrot.lane.b32.xlu0 %v768, 8
      %v845 = vpop.permute.xlu0 %844
      %846 = vrot.lane.b32.xlu0 %v770, 8
      %v847 = vpop.permute.xlu0 %846
      %848 = vrot.lane.b32.xlu0 %v773, 8
      %v849 = vpop.permute.xlu0 %848
      %850 = vrot.lane.b32.xlu0 %v775, 8
      %v851 = vpop.permute.xlu0 %850
      %852 = vrot.lane.b32.xlu0 %v778, 8
      %v853 = vpop.permute.xlu0 %852
      %854 = vrot.lane.b32.xlu0 %v780, 8
      %v855 = vpop.permute.xlu0 %854
      %856 = vrot.lane.b32.xlu0 %v783, 8
      %v857 = vpop.permute.xlu0 %856
      %858 = vrot.lane.b32.xlu0 %v785, 8
      %v859 = vpop.permute.xlu0 %858
      %860 = vrot.lane.b32.xlu0 %v788, 8
      %v861 = vpop.permute.xlu0 %860
      %862 = vrot.lane.b32.xlu0 %v790, 8
      %v863 = vpop.permute.xlu0 %862
      %864 = vrot.lane.b32.xlu0 %v793, 8
      %v865 = vpop.permute.xlu0 %864
      %866 = vrot.lane.b32.xlu0 %v795, 8
      %v867 = vpop.permute.xlu0 %866
      %868 = vrot.lane.b32.xlu0 %v798, 8
      %v869 = vpop.permute.xlu0 %868
      %870 = vrot.lane.b32.xlu0 %v800, 8
      %v871 = vpop.permute.xlu0 %870
      %872 = vrot.lane.b32.xlu0 %v803, 8
      %v873 = vpop.permute.xlu0 %872
      %874 = vrot.lane.b32.xlu0 %v805, 8
      %v875 = vpop.permute.xlu0 %874
      %876 = vrot.lane.b32.xlu0 %v808, 8
      %v877 = vpop.permute.xlu0 %876
      %878 = vrot.lane.b32.xlu0 %v810, 8
      %v879 = vpop.permute.xlu0 %878
      %880 = vrot.lane.b32.xlu0 %v813, 8
      %v881 = vpop.permute.xlu0 %880
      %882 = vrot.lane.b32.xlu0 %v815, 8
      %v883 = vpop.permute.xlu0 %882
      %884 = vrot.lane.b32.xlu0 %v818, 8
      %v885 = vpop.permute.xlu0 %884
      %886 = vrot.lane.b32.xlu0 %v820, 8
      %v887 = vpop.permute.xlu0 %886
      %888 = vrot.lane.b32.xlu0 %v823, 8
      %v889 = vpop.permute.xlu0 %888
      %890 = vrot.lane.b32.xlu0 %v825, 8
      %v891 = vpop.permute.xlu0 %890
      %892 = vrot.lane.b32.xlu0 %v828, 8
      %v893 = vpop.permute.xlu0 %892
      %894 = vrot.lane.b32.xlu0 %v830, 8
      %v895 = vpop.permute.xlu0 %894
      %896 = vrot.lane.b32.xlu0 %v833, 8
      %v897 = vpop.permute.xlu0 %896
      %898 = vrot.lane.b32.xlu0 %v835, 8
      %v899 = vpop.permute.xlu0 %898
      %vm932 = vcmask 97344
      %933 = vst.msk [vmem:[#allocation3] sm:$0xff] %vm932, %v837
      %934 = vst.msk [vmem:[#allocation3 + $0x8] sm:$0xff] %vm932, %v839
      %935 = vst.msk [vmem:[#allocation3 + $0x10] sm:$0xff] %vm932, %v841
      %936 = vst.msk [vmem:[#allocation3 + $0x18] sm:$0xff] %vm932, %v843
      %937 = vst.msk [vmem:[#allocation3 + $0x20] sm:$0xff] %vm932, %v845
      %938 = vst.msk [vmem:[#allocation3 + $0x28] sm:$0xff] %vm932, %v847
      %939 = vst.msk [vmem:[#allocation3 + $0x30] sm:$0xff] %vm932, %v849
      %940 = vst.msk [vmem:[#allocation3 + $0x38] sm:$0xff] %vm932, %v851
      %941 = vst.msk [vmem:[#allocation3 + $0x40] sm:$0xff] %vm932, %v853
      %942 = vst.msk [vmem:[#allocation3 + $0x48] sm:$0xff] %vm932, %v855
      %943 = vst.msk [vmem:[#allocation3 + $0x50] sm:$0xff] %vm932, %v857
      %944 = vst.msk [vmem:[#allocation3 + $0x58] sm:$0xff] %vm932, %v859
      %945 = vst.msk [vmem:[#allocation3 + $0x60] sm:$0xff] %vm932, %v861
      %946 = vst.msk [vmem:[#allocation3 + $0x68] sm:$0xff] %vm932, %v863
      %947 = vst.msk [vmem:[#allocation3 + $0x70] sm:$0xff] %vm932, %v865
      %948 = vst.msk [vmem:[#allocation3 + $0x78] sm:$0xff] %vm932, %v867
      %949 = vst.msk [vmem:[#allocation3 + $0x80] sm:$0xff] %vm932, %v869
      %950 = vst.msk [vmem:[#allocation3 + $0x88] sm:$0xff] %vm932, %v871
      %951 = vst.msk [vmem:[#allocation3 + $0x90] sm:$0xff] %vm932, %v873
      %952 = vst.msk [vmem:[#allocation3 + $0x98] sm:$0xff] %vm932, %v875
      %953 = vst.msk [vmem:[#allocation3 + $0xa0] sm:$0xff] %vm932, %v877
      %954 = vst.msk [vmem:[#allocation3 + $0xa8] sm:$0xff] %vm932, %v879
      %955 = vst.msk [vmem:[#allocation3 + $0xb0] sm:$0xff] %vm932, %v881
      %956 = vst.msk [vmem:[#allocation3 + $0xb8] sm:$0xff] %vm932, %v883
      %957 = vst.msk [vmem:[#allocation3 + $0xc0] sm:$0xff] %vm932, %v885
      %958 = vst.msk [vmem:[#allocation3 + $0xc8] sm:$0xff] %vm932, %v887
      %959 = vst.msk [vmem:[#allocation3 + $0xd0] sm:$0xff] %vm932, %v889
      %960 = vst.msk [vmem:[#allocation3 + $0xd8] sm:$0xff] %vm932, %v891
      %961 = vst.msk [vmem:[#allocation3 + $0xe0] sm:$0xff] %vm932, %v893
      %962 = vst.msk [vmem:[#allocation3 + $0xe8] sm:$0xff] %vm932, %v895
      %963 = vst.msk [vmem:[#allocation3 + $0xf0] sm:$0xff] %vm932, %v897
      %964 = vst.msk [vmem:[#allocation3 + $0xf8] sm:$0xff] %vm932, %v899
      %969 = vrot.lane.b32.xlu0 %v411, 12
      %v970 = vpop.permute.xlu0 %969
      %971 = vrot.lane.b32.xlu0 %v412, 12
      %v972 = vpop.permute.xlu0 %971
      %973 = vrot.lane.b32.xlu0 %v414, 12
      %v974 = vpop.permute.xlu0 %973
      %975 = vrot.lane.b32.xlu0 %v415, 12
      %v976 = vpop.permute.xlu0 %975
      %977 = vrot.lane.b32.xlu0 %v417, 12
      %v978 = vpop.permute.xlu0 %977
      %979 = vrot.lane.b32.xlu0 %v418, 12
      %v980 = vpop.permute.xlu0 %979
      %981 = vrot.lane.b32.xlu0 %v420, 12
      %v982 = vpop.permute.xlu0 %981
      %983 = vrot.lane.b32.xlu0 %v421, 12
      %v984 = vpop.permute.xlu0 %983
      %985 = vrot.lane.b32.xlu0 %v423, 12
      %v986 = vpop.permute.xlu0 %985
      %987 = vrot.lane.b32.xlu0 %v424, 12
      %v988 = vpop.permute.xlu0 %987
      %989 = vrot.lane.b32.xlu0 %v426, 12
      %v990 = vpop.permute.xlu0 %989
      %991 = vrot.lane.b32.xlu0 %v427, 12
      %v992 = vpop.permute.xlu0 %991
      %993 = vrot.lane.b32.xlu0 %v429, 12
      %v994 = vpop.permute.xlu0 %993
      %995 = vrot.lane.b32.xlu0 %v430, 12
      %v996 = vpop.permute.xlu0 %995
      %997 = vrot.lane.b32.xlu0 %v432, 12
      %v998 = vpop.permute.xlu0 %997
      %999 = vrot.lane.b32.xlu0 %v433, 12
      %v1000 = vpop.permute.xlu0 %999
      %1001 = vrot.lane.b32.xlu0 %v435, 12
      %v1002 = vpop.permute.xlu0 %1001
      %1003 = vrot.lane.b32.xlu0 %v436, 12
      %v1004 = vpop.permute.xlu0 %1003
      %1005 = vrot.lane.b32.xlu0 %v438, 12
      %v1006 = vpop.permute.xlu0 %1005
      %1007 = vrot.lane.b32.xlu0 %v439, 12
      %v1008 = vpop.permute.xlu0 %1007
      %1009 = vrot.lane.b32.xlu0 %v441, 12
      %v1010 = vpop.permute.xlu0 %1009
      %1011 = vrot.lane.b32.xlu0 %v442, 12
      %v1012 = vpop.permute.xlu0 %1011
      %1013 = vrot.lane.b32.xlu0 %v444, 12
      %v1014 = vpop.permute.xlu0 %1013
      %1015 = vrot.lane.b32.xlu0 %v445, 12
      %v1016 = vpop.permute.xlu0 %1015
      %1017 = vrot.lane.b32.xlu0 %v447, 12
      %v1018 = vpop.permute.xlu0 %1017
      %1019 = vrot.lane.b32.xlu0 %v448, 12
      %v1020 = vpop.permute.xlu0 %1019
      %1021 = vrot.lane.b32.xlu0 %v450, 12
      %v1022 = vpop.permute.xlu0 %1021
      %1023 = vrot.lane.b32.xlu0 %v451, 12
      %v1024 = vpop.permute.xlu0 %1023
      %1025 = vrot.lane.b32.xlu0 %v453, 12
      %v1026 = vpop.permute.xlu0 %1025
      %1027 = vrot.lane.b32.xlu0 %v454, 12
      %v1028 = vpop.permute.xlu0 %1027
      %1029 = vrot.lane.b32.xlu0 %v456, 12
      %v1030 = vpop.permute.xlu0 %1029
      %1031 = vrot.lane.b32.xlu0 %v457, 12
      %v1032 = vpop.permute.xlu0 %1031
      %vm1065 = vcmask 130144
      %1066 = vst.msk [vmem:[#allocation3] sm:$0xff] %vm1065, %v970
      %1067 = vst.msk [vmem:[#allocation3 + $0x8] sm:$0xff] %vm1065, %v972
      %1068 = vst.msk [vmem:[#allocation3 + $0x10] sm:$0xff] %vm1065, %v974
      %1069 = vst.msk [vmem:[#allocation3 + $0x18] sm:$0xff] %vm1065, %v976
      %1070 = vst.msk [vmem:[#allocation3 + $0x20] sm:$0xff] %vm1065, %v978
      %1071 = vst.msk [vmem:[#allocation3 + $0x28] sm:$0xff] %vm1065, %v980
      %1072 = vst.msk [vmem:[#allocation3 + $0x30] sm:$0xff] %vm1065, %v982
      %1073 = vst.msk [vmem:[#allocation3 + $0x38] sm:$0xff] %vm1065, %v984
      %1074 = vst.msk [vmem:[#allocation3 + $0x40] sm:$0xff] %vm1065, %v986
      %1075 = vst.msk [vmem:[#allocation3 + $0x48] sm:$0xff] %vm1065, %v988
      %1076 = vst.msk [vmem:[#allocation3 + $0x50] sm:$0xff] %vm1065, %v990
      %1077 = vst.msk [vmem:[#allocation3 + $0x58] sm:$0xff] %vm1065, %v992
      %1078 = vst.msk [vmem:[#allocation3 + $0x60] sm:$0xff] %vm1065, %v994
      %1079 = vst.msk [vmem:[#allocation3 + $0x68] sm:$0xff] %vm1065, %v996
      %1080 = vst.msk [vmem:[#allocation3 + $0x70] sm:$0xff] %vm1065, %v998
      %1081 = vst.msk [vmem:[#allocation3 + $0x78] sm:$0xff] %vm1065, %v1000
      %1082 = vst.msk [vmem:[#allocation3 + $0x80] sm:$0xff] %vm1065, %v1002
      %1083 = vst.msk [vmem:[#allocation3 + $0x88] sm:$0xff] %vm1065, %v1004
      %1084 = vst.msk [vmem:[#allocation3 + $0x90] sm:$0xff] %vm1065, %v1006
      %1085 = vst.msk [vmem:[#allocation3 + $0x98] sm:$0xff] %vm1065, %v1008
      %1086 = vst.msk [vmem:[#allocation3 + $0xa0] sm:$0xff] %vm1065, %v1010
      %1087 = vst.msk [vmem:[#allocation3 + $0xa8] sm:$0xff] %vm1065, %v1012
      %1088 = vst.msk [vmem:[#allocation3 + $0xb0] sm:$0xff] %vm1065, %v1014
      %1089 = vst.msk [vmem:[#allocation3 + $0xb8] sm:$0xff] %vm1065, %v1016
      %1090 = vst.msk [vmem:[#allocation3 + $0xc0] sm:$0xff] %vm1065, %v1018
      %1091 = vst.msk [vmem:[#allocation3 + $0xc8] sm:$0xff] %vm1065, %v1020
      %1092 = vst.msk [vmem:[#allocation3 + $0xd0] sm:$0xff] %vm1065, %v1022
      %1093 = vst.msk [vmem:[#allocation3 + $0xd8] sm:$0xff] %vm1065, %v1024
      %1094 = vst.msk [vmem:[#allocation3 + $0xe0] sm:$0xff] %vm1065, %v1026
      %1095 = vst.msk [vmem:[#allocation3 + $0xe8] sm:$0xff] %vm1065, %v1028
      %1096 = vst.msk [vmem:[#allocation3 + $0xf0] sm:$0xff] %vm1065, %v1030
      %1097 = vst.msk [vmem:[#allocation3 + $0xf8] sm:$0xff] %vm1065, %v1032
      %v1100 = vrot.slane %v453, 2
      %v1101 = vrot.slane %v454, 2
      %v1102 = vsel %vm545, %v1100, %v1101
      %v1103 = vrot.slane %v455, 2
      %v1104 = vsel %vm545, %v1101, %v1103
      %v1105 = vrot.slane %v456, 2
      %v1106 = vrot.slane %v457, 2
      %v1107 = vsel %vm545, %v1105, %v1106
      %v1108 = vrot.slane %v458, 2
      %v1109 = vsel %vm545, %v1106, %v1108
      %1110 = vrot.lane.b32.xlu0 %v558, 16
      %v1111 = vpop.permute.xlu0 %1110
      %1112 = vrot.lane.b32.xlu0 %v560, 16
      %v1113 = vpop.permute.xlu0 %1112
      %1114 = vrot.lane.b32.xlu0 %v563, 16
      %v1115 = vpop.permute.xlu0 %1114
      %1116 = vrot.lane.b32.xlu0 %v565, 16
      %v1117 = vpop.permute.xlu0 %1116
      %1118 = vrot.lane.b32.xlu0 %v568, 16
      %v1119 = vpop.permute.xlu0 %1118
      %1120 = vrot.lane.b32.xlu0 %v570, 16
      %v1121 = vpop.permute.xlu0 %1120
      %1122 = vrot.lane.b32.xlu0 %v573, 16
      %v1123 = vpop.permute.xlu0 %1122
      %1124 = vrot.lane.b32.xlu0 %v575, 16
      %v1125 = vpop.permute.xlu0 %1124
      %1126 = vrot.lane.b32.xlu0 %v578, 16
      %v1127 = vpop.permute.xlu0 %1126
      %1128 = vrot.lane.b32.xlu0 %v580, 16
      %v1129 = vpop.permute.xlu0 %1128
      %1130 = vrot.lane.b32.xlu0 %v583, 16
      %v1131 = vpop.permute.xlu0 %1130
      %1132 = vrot.lane.b32.xlu0 %v585, 16
      %v1133 = vpop.permute.xlu0 %1132
      %1134 = vrot.lane.b32.xlu0 %v588, 16
      %v1135 = vpop.permute.xlu0 %1134
      %1136 = vrot.lane.b32.xlu0 %v590, 16
      %v1137 = vpop.permute.xlu0 %1136
      %1138 = vrot.lane.b32.xlu0 %v593, 16
      %v1139 = vpop.permute.xlu0 %1138
      %1140 = vrot.lane.b32.xlu0 %v595, 16
      %v1141 = vpop.permute.xlu0 %1140
      %1142 = vrot.lane.b32.xlu0 %v598, 16
      %v1143 = vpop.permute.xlu0 %1142
      %1144 = vrot.lane.b32.xlu0 %v600, 16
      %v1145 = vpop.permute.xlu0 %1144
      %1146 = vrot.lane.b32.xlu0 %v603, 16
      %v1147 = vpop.permute.xlu0 %1146
      %1148 = vrot.lane.b32.xlu0 %v605, 16
      %v1149 = vpop.permute.xlu0 %1148
      %1150 = vrot.lane.b32.xlu0 %v608, 16
      %v1151 = vpop.permute.xlu0 %1150
      %1152 = vrot.lane.b32.xlu0 %v610, 16
      %v1153 = vpop.permute.xlu0 %1152
      %1154 = vrot.lane.b32.xlu0 %v613, 16
      %v1155 = vpop.permute.xlu0 %1154
      %1156 = vrot.lane.b32.xlu0 %v615, 16
      %v1157 = vpop.permute.xlu0 %1156
      %1158 = vrot.lane.b32.xlu0 %v618, 16
      %v1159 = vpop.permute.xlu0 %1158
      %1160 = vrot.lane.b32.xlu0 %v620, 16
      %v1161 = vpop.permute.xlu0 %1160
      %1162 = vrot.lane.b32.xlu0 %v623, 16
      %v1163 = vpop.permute.xlu0 %1162
      %1164 = vrot.lane.b32.xlu0 %v625, 16
      %v1165 = vpop.permute.xlu0 %1164
      %1166 = vrot.lane.b32.xlu0 %v1102, 16
      %v1167 = vpop.permute.xlu0 %1166
      %1168 = vrot.lane.b32.xlu0 %v1104, 16
      %v1169 = vpop.permute.xlu0 %1168
      %1170 = vrot.lane.b32.xlu0 %v1107, 16
      %v1171 = vpop.permute.xlu0 %1170
      %1172 = vrot.lane.b32.xlu0 %v1109, 16
      %v1173 = vpop.permute.xlu0 %1172
      %vm1206 = vcmask 162944
      %1207 = vst.msk [vmem:[#allocation3] sm:$0xff] %vm1206, %v1111
      %1208 = vst.msk [vmem:[#allocation3 + $0x8] sm:$0xff] %vm1206, %v1113
      %1209 = vst.msk [vmem:[#allocation3 + $0x10] sm:$0xff] %vm1206, %v1115
      %1210 = vst.msk [vmem:[#allocation3 + $0x18] sm:$0xff] %vm1206, %v1117
      %1211 = vst.msk [vmem:[#allocation3 + $0x20] sm:$0xff] %vm1206, %v1119
      %1212 = vst.msk [vmem:[#allocation3 + $0x28] sm:$0xff] %vm1206, %v1121
      %1213 = vst.msk [vmem:[#allocation3 + $0x30] sm:$0xff] %vm1206, %v1123
      %1214 = vst.msk [vmem:[#allocation3 + $0x38] sm:$0xff] %vm1206, %v1125
      %1215 = vst.msk [vmem:[#allocation3 + $0x40] sm:$0xff] %vm1206, %v1127
      %1216 = vst.msk [vmem:[#allocation3 + $0x48] sm:$0xff] %vm1206, %v1129
      %1217 = vst.msk [vmem:[#allocation3 + $0x50] sm:$0xff] %vm1206, %v1131
      %1218 = vst.msk [vmem:[#allocation3 + $0x58] sm:$0xff] %vm1206, %v1133
      %1219 = vst.msk [vmem:[#allocation3 + $0x60] sm:$0xff] %vm1206, %v1135
      %1220 = vst.msk [vmem:[#allocation3 + $0x68] sm:$0xff] %vm1206, %v1137
      %1221 = vst.msk [vmem:[#allocation3 + $0x70] sm:$0xff] %vm1206, %v1139
      %1222 = vst.msk [vmem:[#allocation3 + $0x78] sm:$0xff] %vm1206, %v1141
      %1223 = vst.msk [vmem:[#allocation3 + $0x80] sm:$0xff] %vm1206, %v1143
      %1224 = vst.msk [vmem:[#allocation3 + $0x88] sm:$0xff] %vm1206, %v1145
      %1225 = vst.msk [vmem:[#allocation3 + $0x90] sm:$0xff] %vm1206, %v1147
      %1226 = vst.msk [vmem:[#allocation3 + $0x98] sm:$0xff] %vm1206, %v1149
      %1227 = vst.msk [vmem:[#allocation3 + $0xa0] sm:$0xff] %vm1206, %v1151
      %1228 = vst.msk [vmem:[#allocation3 + $0xa8] sm:$0xff] %vm1206, %v1153
      %1229 = vst.msk [vmem:[#allocation3 + $0xb0] sm:$0xff] %vm1206, %v1155
      %1230 = vst.msk [vmem:[#allocation3 + $0xb8] sm:$0xff] %vm1206, %v1157
      %1231 = vst.msk [vmem:[#allocation3 + $0xc0] sm:$0xff] %vm1206, %v1159
      %1232 = vst.msk [vmem:[#allocation3 + $0xc8] sm:$0xff] %vm1206, %v1161
      %1233 = vst.msk [vmem:[#allocation3 + $0xd0] sm:$0xff] %vm1206, %v1163
      %1234 = vst.msk [vmem:[#allocation3 + $0xd8] sm:$0xff] %vm1206, %v1165
      %1235 = vst.msk [vmem:[#allocation3 + $0xe0] sm:$0xff] %vm1206, %v1167
      %1236 = vst.msk [vmem:[#allocation3 + $0xe8] sm:$0xff] %vm1206, %v1169
      %1237 = vst.msk [vmem:[#allocation3 + $0xf0] sm:$0xff] %vm1206, %v1171
      %1238 = vst.msk [vmem:[#allocation3 + $0xf8] sm:$0xff] %vm1206, %v1173
      %v1239 = vrot.slane %v453, 4
      %v1240 = vrot.slane %v454, 4
      %v1241 = vsel %vm755, %v1239, %v1240
      %v1242 = vrot.slane %v455, 4
      %v1243 = vsel %vm755, %v1240, %v1242
      %v1244 = vrot.slane %v456, 4
      %v1245 = vrot.slane %v457, 4
      %v1246 = vsel %vm755, %v1244, %v1245
      %v1247 = vrot.slane %v458, 4
      %v1248 = vsel %vm755, %v1245, %v1247
      %1249 = vrot.lane.b32.xlu0 %v768, 20
      %v1250 = vpop.permute.xlu0 %1249
      %1251 = vrot.lane.b32.xlu0 %v770, 20
      %v1252 = vpop.permute.xlu0 %1251
      %1253 = vrot.lane.b32.xlu0 %v773, 20
      %v1254 = vpop.permute.xlu0 %1253
      %1255 = vrot.lane.b32.xlu0 %v775, 20
      %v1256 = vpop.permute.xlu0 %1255
      %1257 = vrot.lane.b32.xlu0 %v778, 20
      %v1258 = vpop.permute.xlu0 %1257
      %1259 = vrot.lane.b32.xlu0 %v780, 20
      %v1260 = vpop.permute.xlu0 %1259
      %1261 = vrot.lane.b32.xlu0 %v783, 20
      %v1262 = vpop.permute.xlu0 %1261
      %1263 = vrot.lane.b32.xlu0 %v785, 20
      %v1264 = vpop.permute.xlu0 %1263
      %1265 = vrot.lane.b32.xlu0 %v788, 20
      %v1266 = vpop.permute.xlu0 %1265
      %1267 = vrot.lane.b32.xlu0 %v790, 20
      %v1268 = vpop.permute.xlu0 %1267
      %1269 = vrot.lane.b32.xlu0 %v793, 20
      %v1270 = vpop.permute.xlu0 %1269
      %1271 = vrot.lane.b32.xlu0 %v795, 20
      %v1272 = vpop.permute.xlu0 %1271
      %1273 = vrot.lane.b32.xlu0 %v798, 20
      %v1274 = vpop.permute.xlu0 %1273
      %1275 = vrot.lane.b32.xlu0 %v800, 20
      %v1276 = vpop.permute.xlu0 %1275
      %1277 = vrot.lane.b32.xlu0 %v803, 20
      %v1278 = vpop.permute.xlu0 %1277
      %1279 = vrot.lane.b32.xlu0 %v805, 20
      %v1280 = vpop.permute.xlu0 %1279
      %1281 = vrot.lane.b32.xlu0 %v808, 20
      %v1282 = vpop.permute.xlu0 %1281
      %1283 = vrot.lane.b32.xlu0 %v810, 20
      %v1284 = vpop.permute.xlu0 %1283
      %1285 = vrot.lane.b32.xlu0 %v813, 20
      %v1286 = vpop.permute.xlu0 %1285
      %1287 = vrot.lane.b32.xlu0 %v815, 20
      %v1288 = vpop.permute.xlu0 %1287
      %1289 = vrot.lane.b32.xlu0 %v818, 20
      %v1290 = vpop.permute.xlu0 %1289
      %1291 = vrot.lane.b32.xlu0 %v820, 20
      %v1292 = vpop.permute.xlu0 %1291
      %1293 = vrot.lane.b32.xlu0 %v823, 20
      %v1294 = vpop.permute.xlu0 %1293
      %1295 = vrot.lane.b32.xlu0 %v825, 20
      %v1296 = vpop.permute.xlu0 %1295
      %1297 = vrot.lane.b32.xlu0 %v828, 20
      %v1298 = vpop.permute.xlu0 %1297
      %1299 = vrot.lane.b32.xlu0 %v830, 20
      %v1300 = vpop.permute.xlu0 %1299
      %1301 = vrot.lane.b32.xlu0 %v833, 20
      %v1302 = vpop.permute.xlu0 %1301
      %1303 = vrot.lane.b32.xlu0 %v835, 20
      %v1304 = vpop.permute.xlu0 %1303
      %1305 = vrot.lane.b32.xlu0 %v1241, 20
      %v1306 = vpop.permute.xlu0 %1305
      %1307 = vrot.lane.b32.xlu0 %v1243, 20
      %v1308 = vpop.permute.xlu0 %1307
      %1309 = vrot.lane.b32.xlu0 %v1246, 20
      %v1310 = vpop.permute.xlu0 %1309
      %1311 = vrot.lane.b32.xlu0 %v1248, 20
      %v1312 = vpop.permute.xlu0 %1311
      %vm1345 = vcmask 195744
      %1346 = vst.msk [vmem:[#allocation3] sm:$0xff] %vm1345, %v1250
      %1347 = vst.msk [vmem:[#allocation3 + $0x8] sm:$0xff] %vm1345, %v1252
      %1348 = vst.msk [vmem:[#allocation3 + $0x10] sm:$0xff] %vm1345, %v1254
      %1349 = vst.msk [vmem:[#allocation3 + $0x18] sm:$0xff] %vm1345, %v1256
      %1350 = vst.msk [vmem:[#allocation3 + $0x20] sm:$0xff] %vm1345, %v1258
      %1351 = vst.msk [vmem:[#allocation3 + $0x28] sm:$0xff] %vm1345, %v1260
      %1352 = vst.msk [vmem:[#allocation3 + $0x30] sm:$0xff] %vm1345, %v1262
      %1353 = vst.msk [vmem:[#allocation3 + $0x38] sm:$0xff] %vm1345, %v1264
      %1354 = vst.msk [vmem:[#allocation3 + $0x40] sm:$0xff] %vm1345, %v1266
      %1355 = vst.msk [vmem:[#allocation3 + $0x48] sm:$0xff] %vm1345, %v1268
      %1356 = vst.msk [vmem:[#allocation3 + $0x50] sm:$0xff] %vm1345, %v1270
      %1357 = vst.msk [vmem:[#allocation3 + $0x58] sm:$0xff] %vm1345, %v1272
      %1358 = vst.msk [vmem:[#allocation3 + $0x60] sm:$0xff] %vm1345, %v1274
      %1359 = vst.msk [vmem:[#allocation3 + $0x68] sm:$0xff] %vm1345, %v1276
      %1360 = vst.msk [vmem:[#allocation3 + $0x70] sm:$0xff] %vm1345, %v1278
      %1361 = vst.msk [vmem:[#allocation3 + $0x78] sm:$0xff] %vm1345, %v1280
      %1362 = vst.msk [vmem:[#allocation3 + $0x80] sm:$0xff] %vm1345, %v1282
      %1363 = vst.msk [vmem:[#allocation3 + $0x88] sm:$0xff] %vm1345, %v1284
      %1364 = vst.msk [vmem:[#allocation3 + $0x90] sm:$0xff] %vm1345, %v1286
      %1365 = vst.msk [vmem:[#allocation3 + $0x98] sm:$0xff] %vm1345, %v1288
      %1366 = vst.msk [vmem:[#allocation3 + $0xa0] sm:$0xff] %vm1345, %v1290
      %1367 = vst.msk [vmem:[#allocation3 + $0xa8] sm:$0xff] %vm1345, %v1292
      %1368 = vst.msk [vmem:[#allocation3 + $0xb0] sm:$0xff] %vm1345, %v1294
      %1369 = vst.msk [vmem:[#allocation3 + $0xb8] sm:$0xff] %vm1345, %v1296
      %1370 = vst.msk [vmem:[#allocation3 + $0xc0] sm:$0xff] %vm1345, %v1298
      %1371 = vst.msk [vmem:[#allocation3 + $0xc8] sm:$0xff] %vm1345, %v1300
      %1372 = vst.msk [vmem:[#allocation3 + $0xd0] sm:$0xff] %vm1345, %v1302
      %1373 = vst.msk [vmem:[#allocation3 + $0xd8] sm:$0xff] %vm1345, %v1304
      %1374 = vst.msk [vmem:[#allocation3 + $0xe0] sm:$0xff] %vm1345, %v1306
      %1375 = vst.msk [vmem:[#allocation3 + $0xe8] sm:$0xff] %vm1345, %v1308
      %1376 = vst.msk [vmem:[#allocation3 + $0xf0] sm:$0xff] %vm1345, %v1310
      %1377 = vst.msk [vmem:[#allocation3 + $0xf8] sm:$0xff] %vm1345, %v1312
      %1382 = vrot.lane.b32.xlu0 %v417, 24
      %v1383 = vpop.permute.xlu0 %1382
      %1384 = vrot.lane.b32.xlu0 %v418, 24
      %v1385 = vpop.permute.xlu0 %1384
      %1386 = vrot.lane.b32.xlu0 %v420, 24
      %v1387 = vpop.permute.xlu0 %1386
      %1388 = vrot.lane.b32.xlu0 %v421, 24
      %v1389 = vpop.permute.xlu0 %1388
      %1390 = vrot.lane.b32.xlu0 %v423, 24
      %v1391 = vpop.permute.xlu0 %1390
      %1392 = vrot.lane.b32.xlu0 %v424, 24
      %v1393 = vpop.permute.xlu0 %1392
      %1394 = vrot.lane.b32.xlu0 %v426, 24
      %v1395 = vpop.permute.xlu0 %1394
      %1396 = vrot.lane.b32.xlu0 %v427, 24
      %v1397 = vpop.permute.xlu0 %1396
      %1398 = vrot.lane.b32.xlu0 %v429, 24
      %v1399 = vpop.permute.xlu0 %1398
      %1400 = vrot.lane.b32.xlu0 %v430, 24
      %v1401 = vpop.permute.xlu0 %1400
      %1402 = vrot.lane.b32.xlu0 %v432, 24
      %v1403 = vpop.permute.xlu0 %1402
      %1404 = vrot.lane.b32.xlu0 %v433, 24
      %v1405 = vpop.permute.xlu0 %1404
      %1406 = vrot.lane.b32.xlu0 %v435, 24
      %v1407 = vpop.permute.xlu0 %1406
      %1408 = vrot.lane.b32.xlu0 %v436, 24
      %v1409 = vpop.permute.xlu0 %1408
      %1410 = vrot.lane.b32.xlu0 %v438, 24
      %v1411 = vpop.permute.xlu0 %1410
      %1412 = vrot.lane.b32.xlu0 %v439, 24
      %v1413 = vpop.permute.xlu0 %1412
      %1414 = vrot.lane.b32.xlu0 %v441, 24
      %v1415 = vpop.permute.xlu0 %1414
      %1416 = vrot.lane.b32.xlu0 %v442, 24
      %v1417 = vpop.permute.xlu0 %1416
      %1418 = vrot.lane.b32.xlu0 %v444, 24
      %v1419 = vpop.permute.xlu0 %1418
      %1420 = vrot.lane.b32.xlu0 %v445, 24
      %v1421 = vpop.permute.xlu0 %1420
      %1422 = vrot.lane.b32.xlu0 %v447, 24
      %v1423 = vpop.permute.xlu0 %1422
      %1424 = vrot.lane.b32.xlu0 %v448, 24
      %v1425 = vpop.permute.xlu0 %1424
      %1426 = vrot.lane.b32.xlu0 %v450, 24
      %v1427 = vpop.permute.xlu0 %1426
      %1428 = vrot.lane.b32.xlu0 %v451, 24
      %v1429 = vpop.permute.xlu0 %1428
      %1430 = vrot.lane.b32.xlu0 %v453, 24
      %v1431 = vpop.permute.xlu0 %1430
      %1432 = vrot.lane.b32.xlu0 %v454, 24
      %v1433 = vpop.permute.xlu0 %1432
      %1434 = vrot.lane.b32.xlu0 %v456, 24
      %v1435 = vpop.permute.xlu0 %1434
      %1436 = vrot.lane.b32.xlu0 %v457, 24
      %v1437 = vpop.permute.xlu0 %1436
      %1438 = vrot.lane.b32.xlu0 %v459, 24
      %v1439 = vpop.permute.xlu0 %1438
      %1440 = vrot.lane.b32.xlu0 %v460, 24
      %v1441 = vpop.permute.xlu0 %1440
      %1442 = vrot.lane.b32.xlu0 %v462, 24
      %v1443 = vpop.permute.xlu0 %1442
      %1444 = vrot.lane.b32.xlu0 %v463, 24
      %v1445 = vpop.permute.xlu0 %1444
      %vm1478 = vcmask 228544
      %1479 = vst.msk [vmem:[#allocation3] sm:$0xff] %vm1478, %v1383
      %1480 = vst.msk [vmem:[#allocation3 + $0x8] sm:$0xff] %vm1478, %v1385
      %1481 = vst.msk [vmem:[#allocation3 + $0x10] sm:$0xff] %vm1478, %v1387
      %1482 = vst.msk [vmem:[#allocation3 + $0x18] sm:$0xff] %vm1478, %v1389
      %1483 = vst.msk [vmem:[#allocation3 + $0x20] sm:$0xff] %vm1478, %v1391
      %1484 = vst.msk [vmem:[#allocation3 + $0x28] sm:$0xff] %vm1478, %v1393
      %1485 = vst.msk [vmem:[#allocation3 + $0x30] sm:$0xff] %vm1478, %v1395
      %1486 = vst.msk [vmem:[#allocation3 + $0x38] sm:$0xff] %vm1478, %v1397
      %1487 = vst.msk [vmem:[#allocation3 + $0x40] sm:$0xff] %vm1478, %v1399
      %1488 = vst.msk [vmem:[#allocation3 + $0x48] sm:$0xff] %vm1478, %v1401
      %1489 = vst.msk [vmem:[#allocation3 + $0x50] sm:$0xff] %vm1478, %v1403
      %1490 = vst.msk [vmem:[#allocation3 + $0x58] sm:$0xff] %vm1478, %v1405
      %1491 = vst.msk [vmem:[#allocation3 + $0x60] sm:$0xff] %vm1478, %v1407
      %1492 = vst.msk [vmem:[#allocation3 + $0x68] sm:$0xff] %vm1478, %v1409
      %1493 = vst.msk [vmem:[#allocation3 + $0x70] sm:$0xff] %vm1478, %v1411
      %1494 = vst.msk [vmem:[#allocation3 + $0x78] sm:$0xff] %vm1478, %v1413
      %1495 = vst.msk [vmem:[#allocation3 + $0x80] sm:$0xff] %vm1478, %v1415
      %1496 = vst.msk [vmem:[#allocation3 + $0x88] sm:$0xff] %vm1478, %v1417
      %1497 = vst.msk [vmem:[#allocation3 + $0x90] sm:$0xff] %vm1478, %v1419
      %1498 = vst.msk [vmem:[#allocation3 + $0x98] sm:$0xff] %vm1478, %v1421
      %1499 = vst.msk [vmem:[#allocation3 + $0xa0] sm:$0xff] %vm1478, %v1423
      %1500 = vst.msk [vmem:[#allocation3 + $0xa8] sm:$0xff] %vm1478, %v1425
      %1501 = vst.msk [vmem:[#allocation3 + $0xb0] sm:$0xff] %vm1478, %v1427
      %1502 = vst.msk [vmem:[#allocation3 + $0xb8] sm:$0xff] %vm1478, %v1429
      %1503 = vst.msk [vmem:[#allocation3 + $0xc0] sm:$0xff] %vm1478, %v1431
      %1504 = vst.msk [vmem:[#allocation3 + $0xc8] sm:$0xff] %vm1478, %v1433
      %1505 = vst.msk [vmem:[#allocation3 + $0xd0] sm:$0xff] %vm1478, %v1435
      %1506 = vst.msk [vmem:[#allocation3 + $0xd8] sm:$0xff] %vm1478, %v1437
      %1507 = vst.msk [vmem:[#allocation3 + $0xe0] sm:$0xff] %vm1478, %v1439
      %1508 = vst.msk [vmem:[#allocation3 + $0xe8] sm:$0xff] %vm1478, %v1441
      %1509 = vst.msk [vmem:[#allocation3 + $0xf0] sm:$0xff] %vm1478, %v1443
      %1510 = vst.msk [vmem:[#allocation3 + $0xf8] sm:$0xff] %vm1478, %v1445
      %v1513 = vrot.slane %v459, 2
      %v1514 = vrot.slane %v460, 2
      %v1515 = vsel %vm545, %v1513, %v1514
      %v1516 = vrot.slane %v461, 2
      %v1517 = vsel %vm545, %v1514, %v1516
      %v1518 = vrot.slane %v462, 2
      %v1519 = vrot.slane %v463, 2
      %v1520 = vsel %vm545, %v1518, %v1519
      %v1521 = vrot.slane %v464, 2
      %v1522 = vsel %vm545, %v1519, %v1521
      %1523 = vrot.lane.b32.xlu0 %v568, 28
      %v1524 = vpop.permute.xlu0 %1523
      %1525 = vrot.lane.b32.xlu0 %v570, 28
      %v1526 = vpop.permute.xlu0 %1525
      %1527 = vrot.lane.b32.xlu0 %v573, 28
      %v1528 = vpop.permute.xlu0 %1527
      %1529 = vrot.lane.b32.xlu0 %v575, 28
      %v1530 = vpop.permute.xlu0 %1529
      %1531 = vrot.lane.b32.xlu0 %v578, 28
      %v1532 = vpop.permute.xlu0 %1531
      %1533 = vrot.lane.b32.xlu0 %v580, 28
      %v1534 = vpop.permute.xlu0 %1533
      %1535 = vrot.lane.b32.xlu0 %v583, 28
      %v1536 = vpop.permute.xlu0 %1535
      %1537 = vrot.lane.b32.xlu0 %v585, 28
      %v1538 = vpop.permute.xlu0 %1537
      %1539 = vrot.lane.b32.xlu0 %v588, 28
      %v1540 = vpop.permute.xlu0 %1539
      %1541 = vrot.lane.b32.xlu0 %v590, 28
      %v1542 = vpop.permute.xlu0 %1541
      %1543 = vrot.lane.b32.xlu0 %v593, 28
      %v1544 = vpop.permute.xlu0 %1543
      %1545 = vrot.lane.b32.xlu0 %v595, 28
      %v1546 = vpop.permute.xlu0 %1545
      %1547 = vrot.lane.b32.xlu0 %v598, 28
      %v1548 = vpop.permute.xlu0 %1547
      %1549 = vrot.lane.b32.xlu0 %v600, 28
      %v1550 = vpop.permute.xlu0 %1549
      %1551 = vrot.lane.b32.xlu0 %v603, 28
      %v1552 = vpop.permute.xlu0 %1551
      %1553 = vrot.lane.b32.xlu0 %v605, 28
      %v1554 = vpop.permute.xlu0 %1553
      %1555 = vrot.lane.b32.xlu0 %v608, 28
      %v1556 = vpop.permute.xlu0 %1555
      %1557 = vrot.lane.b32.xlu0 %v610, 28
      %v1558 = vpop.permute.xlu0 %1557
      %1559 = vrot.lane.b32.xlu0 %v613, 28
      %v1560 = vpop.permute.xlu0 %1559
      %1561 = vrot.lane.b32.xlu0 %v615, 28
      %v1562 = vpop.permute.xlu0 %1561
      %1563 = vrot.lane.b32.xlu0 %v618, 28
      %v1564 = vpop.permute.xlu0 %1563
      %1565 = vrot.lane.b32.xlu0 %v620, 28
      %v1566 = vpop.permute.xlu0 %1565
      %1567 = vrot.lane.b32.xlu0 %v623, 28
      %v1568 = vpop.permute.xlu0 %1567
      %1569 = vrot.lane.b32.xlu0 %v625, 28
      %v1570 = vpop.permute.xlu0 %1569
      %1571 = vrot.lane.b32.xlu0 %v1102, 28
      %v1572 = vpop.permute.xlu0 %1571
      %1573 = vrot.lane.b32.xlu0 %v1104, 28
      %v1574 = vpop.permute.xlu0 %1573
      %1575 = vrot.lane.b32.xlu0 %v1107, 28
      %v1576 = vpop.permute.xlu0 %1575
      %1577 = vrot.lane.b32.xlu0 %v1109, 28
      %v1578 = vpop.permute.xlu0 %1577
      %1579 = vrot.lane.b32.xlu0 %v1515, 28
      %v1580 = vpop.permute.xlu0 %1579
      %1581 = vrot.lane.b32.xlu0 %v1517, 28
      %v1582 = vpop.permute.xlu0 %1581
      %1583 = vrot.lane.b32.xlu0 %v1520, 28
      %v1584 = vpop.permute.xlu0 %1583
      %1585 = vrot.lane.b32.xlu0 %v1522, 28
      %v1586 = vpop.permute.xlu0 %1585
      %vm1619 = vcmask 261344
      %1620 = vst.msk [vmem:[#allocation3] sm:$0xff] %vm1619, %v1524
      %1621 = vst.msk [vmem:[#allocation3 + $0x8] sm:$0xff] %vm1619, %v1526
      %1622 = vst.msk [vmem:[#allocation3 + $0x10] sm:$0xff] %vm1619, %v1528
      %1623 = vst.msk [vmem:[#allocation3 + $0x18] sm:$0xff] %vm1619, %v1530
      %1624 = vst.msk [vmem:[#allocation3 + $0x20] sm:$0xff] %vm1619, %v1532
      %1625 = vst.msk [vmem:[#allocation3 + $0x28] sm:$0xff] %vm1619, %v1534
      %1626 = vst.msk [vmem:[#allocation3 + $0x30] sm:$0xff] %vm1619, %v1536
      %1627 = vst.msk [vmem:[#allocation3 + $0x38] sm:$0xff] %vm1619, %v1538
      %1628 = vst.msk [vmem:[#allocation3 + $0x40] sm:$0xff] %vm1619, %v1540
      %1629 = vst.msk [vmem:[#allocation3 + $0x48] sm:$0xff] %vm1619, %v1542
      %1630 = vst.msk [vmem:[#allocation3 + $0x50] sm:$0xff] %vm1619, %v1544
      %1631 = vst.msk [vmem:[#allocation3 + $0x58] sm:$0xff] %vm1619, %v1546
      %1632 = vst.msk [vmem:[#allocation3 + $0x60] sm:$0xff] %vm1619, %v1548
      %1633 = vst.msk [vmem:[#allocation3 + $0x68] sm:$0xff] %vm1619, %v1550
      %1634 = vst.msk [vmem:[#allocation3 + $0x70] sm:$0xff] %vm1619, %v1552
      %1635 = vst.msk [vmem:[#allocation3 + $0x78] sm:$0xff] %vm1619, %v1554
      %1636 = vst.msk [vmem:[#allocation3 + $0x80] sm:$0xff] %vm1619, %v1556
      %1637 = vst.msk [vmem:[#allocation3 + $0x88] sm:$0xff] %vm1619, %v1558
      %1638 = vst.msk [vmem:[#allocation3 + $0x90] sm:$0xff] %vm1619, %v1560
      %1639 = vst.msk [vmem:[#allocation3 + $0x98] sm:$0xff] %vm1619, %v1562
      %1640 = vst.msk [vmem:[#allocation3 + $0xa0] sm:$0xff] %vm1619, %v1564
      %1641 = vst.msk [vmem:[#allocation3 + $0xa8] sm:$0xff] %vm1619, %v1566
      %1642 = vst.msk [vmem:[#allocation3 + $0xb0] sm:$0xff] %vm1619, %v1568
      %1643 = vst.msk [vmem:[#allocation3 + $0xb8] sm:$0xff] %vm1619, %v1570
      %1644 = vst.msk [vmem:[#allocation3 + $0xc0] sm:$0xff] %vm1619, %v1572
      %1645 = vst.msk [vmem:[#allocation3 + $0xc8] sm:$0xff] %vm1619, %v1574
      %1646 = vst.msk [vmem:[#allocation3 + $0xd0] sm:$0xff] %vm1619, %v1576
      %1647 = vst.msk [vmem:[#allocation3 + $0xd8] sm:$0xff] %vm1619, %v1578
      %1648 = vst.msk [vmem:[#allocation3 + $0xe0] sm:$0xff] %vm1619, %v1580
      %1649 = vst.msk [vmem:[#allocation3 + $0xe8] sm:$0xff] %vm1619, %v1582
      %1650 = vst.msk [vmem:[#allocation3 + $0xf0] sm:$0xff] %vm1619, %v1584
      %1651 = vst.msk [vmem:[#allocation3 + $0xf8] sm:$0xff] %vm1619, %v1586
      %v1652 = vrot.slane %v459, 4
      %v1653 = vrot.slane %v460, 4
      %v1654 = vsel %vm755, %v1652, %v1653
      %v1655 = vrot.slane %v461, 4
      %v1656 = vsel %vm755, %v1653, %v1655
      %v1657 = vrot.slane %v462, 4
      %v1658 = vrot.slane %v463, 4
      %v1659 = vsel %vm755, %v1657, %v1658
      %v1660 = vrot.slane %v464, 4
      %v1661 = vsel %vm755, %v1658, %v1660
      %1662 = vrot.lane.b32.xlu0 %v778, 32
      %v1663 = vpop.permute.xlu0 %1662
      %1664 = vrot.lane.b32.xlu0 %v780, 32
      %v1665 = vpop.permute.xlu0 %1664
      %1666 = vrot.lane.b32.xlu0 %v783, 32
      %v1667 = vpop.permute.xlu0 %1666
      %1668 = vrot.lane.b32.xlu0 %v785, 32
      %v1669 = vpop.permute.xlu0 %1668
      %1670 = vrot.lane.b32.xlu0 %v788, 32
      %v1671 = vpop.permute.xlu0 %1670
      %1672 = vrot.lane.b32.xlu0 %v790, 32
      %v1673 = vpop.permute.xlu0 %1672
      %1674 = vrot.lane.b32.xlu0 %v793, 32
      %v1675 = vpop.permute.xlu0 %1674
      %1676 = vrot.lane.b32.xlu0 %v795, 32
      %v1677 = vpop.permute.xlu0 %1676
      %1678 = vrot.lane.b32.xlu0 %v798, 32
      %v1679 = vpop.permute.xlu0 %1678
      %1680 = vrot.lane.b32.xlu0 %v800, 32
      %v1681 = vpop.permute.xlu0 %1680
      %1682 = vrot.lane.b32.xlu0 %v803, 32
      %v1683 = vpop.permute.xlu0 %1682
      %1684 = vrot.lane.b32.xlu0 %v805, 32
      %v1685 = vpop.permute.xlu0 %1684
      %1686 = vrot.lane.b32.xlu0 %v808, 32
      %v1687 = vpop.permute.xlu0 %1686
      %1688 = vrot.lane.b32.xlu0 %v810, 32
      %v1689 = vpop.permute.xlu0 %1688
      %1690 = vrot.lane.b32.xlu0 %v813, 32
      %v1691 = vpop.permute.xlu0 %1690
      %1692 = vrot.lane.b32.xlu0 %v815, 32
      %v1693 = vpop.permute.xlu0 %1692
      %1694 = vrot.lane.b32.xlu0 %v818, 32
      %v1695 = vpop.permute.xlu0 %1694
      %1696 = vrot.lane.b32.xlu0 %v820, 32
      %v1697 = vpop.permute.xlu0 %1696
      %1698 = vrot.lane.b32.xlu0 %v823, 32
      %v1699 = vpop.permute.xlu0 %1698
      %1700 = vrot.lane.b32.xlu0 %v825, 32
      %v1701 = vpop.permute.xlu0 %1700
      %1702 = vrot.lane.b32.xlu0 %v828, 32
      %v1703 = vpop.permute.xlu0 %1702
      %1704 = vrot.lane.b32.xlu0 %v830, 32
      %v1705 = vpop.permute.xlu0 %1704
      %1706 = vrot.lane.b32.xlu0 %v833, 32
      %v1707 = vpop.permute.xlu0 %1706
      %1708 = vrot.lane.b32.xlu0 %v835, 32
      %v1709 = vpop.permute.xlu0 %1708
      %1710 = vrot.lane.b32.xlu0 %v1241, 32
      %v1711 = vpop.permute.xlu0 %1710
      %1712 = vrot.lane.b32.xlu0 %v1243, 32
      %v1713 = vpop.permute.xlu0 %1712
      %1714 = vrot.lane.b32.xlu0 %v1246, 32
      %v1715 = vpop.permute.xlu0 %1714
      %1716 = vrot.lane.b32.xlu0 %v1248, 32
      %v1717 = vpop.permute.xlu0 %1716
      %1718 = vrot.lane.b32.xlu0 %v1654, 32
      %v1719 = vpop.permute.xlu0 %1718
      %1720 = vrot.lane.b32.xlu0 %v1656, 32
      %v1721 = vpop.permute.xlu0 %1720
      %1722 = vrot.lane.b32.xlu0 %v1659, 32
      %v1723 = vpop.permute.xlu0 %1722
      %1724 = vrot.lane.b32.xlu0 %v1661, 32
      %v1725 = vpop.permute.xlu0 %1724
      %vm1758 = vcmask 294144
      %1759 = vst.msk [vmem:[#allocation3] sm:$0xff] %vm1758, %v1663
      %1760 = vst.msk [vmem:[#allocation3 + $0x8] sm:$0xff] %vm1758, %v1665
      %1761 = vst.msk [vmem:[#allocation3 + $0x10] sm:$0xff] %vm1758, %v1667
      %1762 = vst.msk [vmem:[#allocation3 + $0x18] sm:$0xff] %vm1758, %v1669
      %1763 = vst.msk [vmem:[#allocation3 + $0x20] sm:$0xff] %vm1758, %v1671
      %1764 = vst.msk [vmem:[#allocation3 + $0x28] sm:$0xff] %vm1758, %v1673
      %1765 = vst.msk [vmem:[#allocation3 + $0x30] sm:$0xff] %vm1758, %v1675
      %1766 = vst.msk [vmem:[#allocation3 + $0x38] sm:$0xff] %vm1758, %v1677
      %1767 = vst.msk [vmem:[#allocation3 + $0x40] sm:$0xff] %vm1758, %v1679
      %1768 = vst.msk [vmem:[#allocation3 + $0x48] sm:$0xff] %vm1758, %v1681
      %1769 = vst.msk [vmem:[#allocation3 + $0x50] sm:$0xff] %vm1758, %v1683
      %1770 = vst.msk [vmem:[#allocation3 + $0x58] sm:$0xff] %vm1758, %v1685
      %1771 = vst.msk [vmem:[#allocation3 + $0x60] sm:$0xff] %vm1758, %v1687
      %1772 = vst.msk [vmem:[#allocation3 + $0x68] sm:$0xff] %vm1758, %v1689
      %1773 = vst.msk [vmem:[#allocation3 + $0x70] sm:$0xff] %vm1758, %v1691
      %1774 = vst.msk [vmem:[#allocation3 + $0x78] sm:$0xff] %vm1758, %v1693
      %1775 = vst.msk [vmem:[#allocation3 + $0x80] sm:$0xff] %vm1758, %v1695
      %1776 = vst.msk [vmem:[#allocation3 + $0x88] sm:$0xff] %vm1758, %v1697
      %1777 = vst.msk [vmem:[#allocation3 + $0x90] sm:$0xff] %vm1758, %v1699
      %1778 = vst.msk [vmem:[#allocation3 + $0x98] sm:$0xff] %vm1758, %v1701
      %1779 = vst.msk [vmem:[#allocation3 + $0xa0] sm:$0xff] %vm1758, %v1703
      %1780 = vst.msk [vmem:[#allocation3 + $0xa8] sm:$0xff] %vm1758, %v1705
      %1781 = vst.msk [vmem:[#allocation3 + $0xb0] sm:$0xff] %vm1758, %v1707
      %1782 = vst.msk [vmem:[#allocation3 + $0xb8] sm:$0xff] %vm1758, %v1709
      %1783 = vst.msk [vmem:[#allocation3 + $0xc0] sm:$0xff] %vm1758, %v1711
      %1784 = vst.msk [vmem:[#allocation3 + $0xc8] sm:$0xff] %vm1758, %v1713
      %1785 = vst.msk [vmem:[#allocation3 + $0xd0] sm:$0xff] %vm1758, %v1715
      %1786 = vst.msk [vmem:[#allocation3 + $0xd8] sm:$0xff] %vm1758, %v1717
      %1787 = vst.msk [vmem:[#allocation3 + $0xe0] sm:$0xff] %vm1758, %v1719
      %1788 = vst.msk [vmem:[#allocation3 + $0xe8] sm:$0xff] %vm1758, %v1721
      %1789 = vst.msk [vmem:[#allocation3 + $0xf0] sm:$0xff] %vm1758, %v1723
      %1790 = vst.msk [vmem:[#allocation3 + $0xf8] sm:$0xff] %vm1758, %v1725
      %v1791 = vld [vmem:[%s1] sm:$0xff]
      %v1792 = vld [vmem:[#allocation3] sm:$0xff]
      %v1793 = vld [vmem:[#allocation3 + $0x8] sm:$0xff]
      %v1794 = vld [vmem:[#allocation3 + $0x10] sm:$0xff]
      %v1795 = vld [vmem:[#allocation3 + $0x18] sm:$0xff]
      %v1796 = vld [vmem:[#allocation3 + $0x20] sm:$0xff]
      %v1797 = vld [vmem:[#allocation3 + $0x28] sm:$0xff]
      %v1798 = vld [vmem:[#allocation3 + $0x30] sm:$0xff]
      %v1799 = vld [vmem:[#allocation3 + $0x38] sm:$0xff]
      %v1800 = vld [vmem:[#allocation3 + $0x40] sm:$0xff]
      %v1801 = vld [vmem:[#allocation3 + $0x48] sm:$0xff]
      %v1802 = vld [vmem:[#allocation3 + $0x50] sm:$0xff]
      %v1803 = vld [vmem:[#allocation3 + $0x58] sm:$0xff]
      %v1804 = vld [vmem:[#allocation3 + $0x60] sm:$0xff]
      %v1805 = vld [vmem:[#allocation3 + $0x68] sm:$0xff]
      %v1806 = vld [vmem:[#allocation3 + $0x70] sm:$0xff]
      %v1807 = vld [vmem:[#allocation3 + $0x78] sm:$0xff]
      %v1808 = vld [vmem:[#allocation3 + $0x80] sm:$0xff]
      %v1809 = vld [vmem:[#allocation3 + $0x88] sm:$0xff]
      %v1810 = vld [vmem:[#allocation3 + $0x90] sm:$0xff]
      %v1811 = vld [vmem:[#allocation3 + $0x98] sm:$0xff]
      %v1812 = vld [vmem:[#allocation3 + $0xa0] sm:$0xff]
      %v1813 = vld [vmem:[#allocation3 + $0xa8] sm:$0xff]
      %v1814 = vld [vmem:[#allocation3 + $0xb0] sm:$0xff]
      %v1815 = vld [vmem:[#allocation3 + $0xb8] sm:$0xff]
      %v1816 = vld [vmem:[#allocation3 + $0xc0] sm:$0xff]
      %v1817 = vld [vmem:[#allocation3 + $0xc8] sm:$0xff]
      %v1818 = vld [vmem:[#allocation3 + $0xd0] sm:$0xff]
      %v1819 = vld [vmem:[#allocation3 + $0xd8] sm:$0xff]
      %v1820 = vld [vmem:[#allocation3 + $0xe0] sm:$0xff]
      %v1821 = vld [vmem:[#allocation3 + $0xe8] sm:$0xff]
      %v1822 = vld [vmem:[#allocation3 + $0xf0] sm:$0xff]
      %v1823 = vld [vmem:[#allocation3 + $0xf8] sm:$0xff]
      %v1824 = vld [vmem:[%s2] sm:$0xff]
      %1826 = vset.pattern.permute.xlu0 0
      %1827 = vperm.xlu0 %1826, %v1824
      %v1828 = vpop.permute.xlu0 %1827
      %vm1830 = vcmask 293888
      %v1832 = vsel %vm1830, %v1791, 0
      %v1835 = vsel %vm1830, %v1792, 0
      %v1838 = vsel %vm1830, %v1793, 0
      %v1841 = vsel %vm1830, %v1794, 0
      %v1844 = vsel %vm1830, %v1795, 0
      %v1847 = vsel %vm1830, %v1796, 0
      %v1850 = vsel %vm1830, %v1797, 0
      %v1853 = vsel %vm1830, %v1798, 0
      %v1856 = vsel %vm1830, %v1799, 0
      %v1859 = vsel %vm1830, %v1800, 0
      %v1862 = vsel %vm1830, %v1801, 0
      %v1865 = vsel %vm1830, %v1802, 0
      %v1868 = vsel %vm1830, %v1803, 0
      %v1871 = vsel %vm1830, %v1804, 0
      %v1874 = vsel %vm1830, %v1805, 0
      %v1877 = vsel %vm1830, %v1806, 0
      %v1880 = vsel %vm1830, %v1807, 0
      %v1883 = vsel %vm1830, %v1808, 0
      %v1886 = vsel %vm1830, %v1809, 0
      %v1889 = vsel %vm1830, %v1810, 0
      %v1892 = vsel %vm1830, %v1811, 0
      %v1895 = vsel %vm1830, %v1812, 0
      %v1898 = vsel %vm1830, %v1813, 0
      %v1901 = vsel %vm1830, %v1814, 0
      %v1904 = vsel %vm1830, %v1815, 0
      %v1907 = vsel %vm1830, %v1816, 0
      %v1910 = vsel %vm1830, %v1817, 0
      %v1913 = vsel %vm1830, %v1818, 0
      %v1916 = vsel %vm1830, %v1819, 0
      %v1919 = vsel %vm1830, %v1820, 0
      %v1922 = vsel %vm1830, %v1821, 0
      %v1925 = vsel %vm1830, %v1822, 0
      %v1928 = vsel %vm1830, %v1823, 0
      %1930 = vmatprep.subr.mxu0 0.0
      %1931 = vmatpush1.xpose.msra.mxu0 %v1835
      %1932 = vmatprep.subr.mxu0 0.0
      %1933 = vmatpush1.xpose.msra.mxu0 %v1838
      %1934 = vmatprep.subr.mxu0 0.0
      %1935 = vmatpush1.xpose.msra.mxu0 %v1841
      %1936 = vmatprep.subr.mxu0 0.0
      %1937 = vmatpush1.xpose.msra.mxu0 %v1844
      %1938 = vmatprep.subr.mxu0 0.0
      %1939 = vmatpush1.xpose.msra.mxu0 %v1847
      %1940 = vmatprep.subr.mxu0 0.0
      %1941 = vmatpush1.xpose.msra.mxu0 %v1850
      %1942 = vmatprep.subr.mxu0 0.0
      %1943 = vmatpush1.xpose.msra.mxu0 %v1853
      %1944 = vmatprep.subr.mxu0 0.0
      %1945 = vmatpush1.xpose.msra.mxu0 %v1856
      %1946 = vmatprep.subr.mxu0 0.0
      %1947 = vmatpush1.xpose.msra.mxu0 %v1859
      %1948 = vmatprep.subr.mxu0 0.0
      %1949 = vmatpush1.xpose.msra.mxu0 %v1862
      %1950 = vmatprep.subr.mxu0 0.0
      %1951 = vmatpush1.xpose.msra.mxu0 %v1865
      %1952 = vmatprep.subr.mxu0 0.0
      %1953 = vmatpush1.xpose.msra.mxu0 %v1868
      %1954 = vmatprep.subr.mxu0 0.0
      %1955 = vmatpush1.xpose.msra.mxu0 %v1871
      %1956 = vmatprep.subr.mxu0 0.0
      %1957 = vmatpush1.xpose.msra.mxu0 %v1874
      %1958 = vmatprep.subr.mxu0 0.0
      %1959 = vmatpush1.xpose.msra.mxu0 %v1877
      %1960 = vmatprep.subr.mxu0 0.0
      %1961 = vmatpush1.xpose.msra.mxu0 %v1880
      %1962 = vmatprep.subr.mxu0 0.0
      %1963 = vmatpush1.xpose.msra.mxu0 %v1883
      %1964 = vmatprep.subr.mxu0 0.0
      %1965 = vmatpush1.xpose.msra.mxu0 %v1886
      %1966 = vmatprep.subr.mxu0 0.0
      %1967 = vmatpush1.xpose.msra.mxu0 %v1889
      %1968 = vmatprep.subr.mxu0 0.0
      %1969 = vmatpush1.xpose.msra.mxu0 %v1892
      %1970 = vmatprep.subr.mxu0 0.0
      %1971 = vmatpush1.xpose.msra.mxu0 %v1895
      %1972 = vmatprep.subr.mxu0 0.0
      %1973 = vmatpush1.xpose.msra.mxu0 %v1898
      %1974 = vmatprep.subr.mxu0 0.0
      %1975 = vmatpush1.xpose.msra.mxu0 %v1901
      %1976 = vmatprep.subr.mxu0 0.0
      %1977 = vmatpush1.xpose.msra.mxu0 %v1904
      %1978 = vmatprep.subr.mxu0 0.0
      %1979 = vmatpush1.xpose.msra.mxu0 %v1907
      %1980 = vmatprep.subr.mxu0 0.0
      %1981 = vmatpush1.xpose.msra.mxu0 %v1910
      %1982 = vmatprep.subr.mxu0 0.0
      %1983 = vmatpush1.xpose.msra.mxu0 %v1913
      %1984 = vmatprep.subr.mxu0 0.0
      %1985 = vmatpush1.xpose.msra.mxu0 %v1916
      %1986 = vmatprep.subr.mxu0 0.0
      %1987 = vmatpush1.xpose.msra.mxu0 %v1919
      %1988 = vmatprep.subr.mxu0 0.0
      %1989 = vmatpush1.xpose.msra.mxu0 %v1922
      %1990 = vmatprep.subr.mxu0 0.0
      %1991 = vmatpush1.xpose.msra.mxu0 %v1925
      %1992 = vmatprep.subr.mxu0 0.0
      %1993 = vmatpush1.xpose.msra.mxu0 %v1928
      %1994 = vmatprep.mubr.f32.mxu0 0.0
      %1995 = vmatmul.mubr.f32.gmra.mrb[0].mxu0 %v1832
      %v1996 = vpop.f32.mrb[0].mxu0
      %v1997 = vadd.f32 %v1828, %v1996
      %v1998 = vpop.f32.mrb[0].mxu0
      %v1999 = vadd.f32 %v1828, %v1998
      %2000 = vdwg.mxu0
      %2001 = vst [vmem:[%s237] sm:$0xff] %v1997
      %2002 = vst [vmem:[%s237 + $0x8] sm:$0xff] %v1999
      %v2003 = vadd.f32 %v1997, %v1999
      %2004 = vadd.xlane.f32.xlu0 %v2003
      %v2005 = vpop.xlane.xlu0 %2004
      %vm2006 = vcmask 7168
      %2007 = vst.msk [vmem:[%s241] sm:$0xff] %vm2006, %v2005
      %v2008 = vmul.f32 %v1997, %v1997
      %v2009 = vmul.f32 %v1999, %v1999
      %v2010 = vadd.f32 %v2008, %v2009
      %2011 = vadd.xlane.f32.xlu0 %v2010
      %v2012 = vpop.xlane.xlu0 %2011
      %2013 = vst.msk [vmem:[%s245] sm:$0xff] %vm2006, %v2012
      %p2014 = scmp.lt.s32.totalorder %s17, 1
      %s2015 = scalar_select %p2014, %s17, 1
      %s2016 = smul.addr %s2015, 2
      %s2017 = smul.addr %s2016, 8
      %s2018 = scalar_lea.vmem %s3, %s2017
      %p2019 = scmp.lt.s32.totalorder %s17, 1
      %s2020 = scalar_select %p2019, %s17, 1
      %s2021 = smul.addr %s2020, 8
      %s2022 = scalar_lea.vmem %s4, %s2021
      %p2023 = scmp.lt.s32.totalorder %s17, 1
      %s2024 = scalar_select %p2023, %s17, 1
      %s2025 = smul.addr %s2024, 8
      %s2026 = scalar_lea.vmem %s5, %s2025
      // Predicated region
      $region33: #{dilated_conv_forward.2} parent=31 // pred_check
        %p2027 = pneg %p103
      $region34: #{dilated_conv_forward.2} parent=31 // pred_check_branch
        %2029 = sbr.rel (%p2027) target = $region36
      $region35: #{dilated_conv_forward.2} parent=31 // pred_region
        _
      $region36: #{dilated_conv_forward.2} parent=31 // pred_fallthru
        _
      // Predicated region
      $region37: #{dilated_conv_forward.2} parent=31 // pred_check
        %p2030 = pneg %p129
      $region38: #{dilated_conv_forward.2} parent=31 // pred_check_branch
        %2032 = sbr.rel (%p2030) target = $region40
      $region39: #{dilated_conv_forward.2} parent=31 // pred_region
        _
      $region40: #{dilated_conv_forward.2} parent=31 // pred_fallthru
        _
      // Predicated region
      $region41: #{dilated_conv_forward.2} parent=31 // pred_check
        %p2033 = pneg %p155
      $region42: #{dilated_conv_forward.2} parent=31 // pred_check_branch
        %2035 = sbr.rel (%p2033) target = $region44
      $region43: #{dilated_conv_forward.2} parent=31 // pred_region
        _
      $region44: #{dilated_conv_forward.2} parent=31 // pred_fallthru
        _
    $region32: #{dilated_conv_forward.2} parent=5 // pred_fallthru
      _
    %p2036 = scmp.le.s32.totalorder 2, %s12
    // Predicated region
    $region45: #{dilated_conv_forward.2} parent=5 // pred_check
      %p2037 = pneg %p2036
    $region46: #{dilated_conv_forward.2} parent=5 // pred_check_branch
      %2039 = sbr.rel (%p2037) target = $region48
    $region47: #{dilated_conv_forward.2} parent=5 // pred_region
      %s2040 = ssub.s32 %s12, 2
      // Predicated region
      $region49: #{dilated_conv_forward.2} parent=47 // pred_check
        %p2041 = pneg %p109
      $region50: #{dilated_conv_forward.2} parent=47 // pred_check_branch
        %2043 = sbr.rel (%p2041) target = $region52
      $region51: #{dilated_conv_forward.2} parent=47 // pred_region
        %p2044 = scmp.lt.s32.totalorder %s18, 1
        %s2045 = scalar_select %p2044, %s18, 1
        %s2046 = smul.addr %s2045, 2
        %s2047 = smul.addr %s2046, 8
        %s2048 = scalar_lea.vmem %s3, %s2047
      $region52: #{dilated_conv_forward.2} parent=47 // pred_fallthru
        _
      // Predicated region
      $region53: #{dilated_conv_forward.2} parent=47 // pred_check
        %p2049 = pneg %p135
      $region54: #{dilated_conv_forward.2} parent=47 // pred_check_branch
        %2051 = sbr.rel (%p2049) target = $region56
      $region55: #{dilated_conv_forward.2} parent=47 // pred_region
        %p2052 = scmp.lt.s32.totalorder %s18, 1
        %s2053 = scalar_select %p2052, %s18, 1
        %s2054 = smul.addr %s2053, 8
        %s2055 = scalar_lea.vmem %s4, %s2054
      $region56: #{dilated_conv_forward.2} parent=47 // pred_fallthru
        _
      // Predicated region
      $region57: #{dilated_conv_forward.2} parent=47 // pred_check
        %p2056 = pneg %p161
      $region58: #{dilated_conv_forward.2} parent=47 // pred_check_branch
        %2058 = sbr.rel (%p2056) target = $region60
      $region59: #{dilated_conv_forward.2} parent=47 // pred_region
        %p2059 = scmp.lt.s32.totalorder %s18, 1
        %s2060 = scalar_select %p2059, %s18, 1
        %s2061 = smul.addr %s2060, 8
        %s2062 = scalar_lea.vmem %s5, %s2061
      $region60: #{dilated_conv_forward.2} parent=47 // pred_fallthru
        _
    $region48: #{dilated_conv_forward.2} parent=5 // pred_fallthru
      _
  $region6: #{dilated_conv_forward.2} parent=0 // loop_footer
    %s16 = sadd.s32 1, %s12
  $region7: #{dilated_conv_forward.2} parent=0 // loop_footer_branch
    %11 = sbr.rel target = $region3
  $region8: #{dilated_conv_forward.2} parent=0 // loop_exit
    _

</llo_original>
